<compile_context>
chip_gen: v5e
topology: v5e:2x2
jax: 0.10.0
libtpu: 0.0.40
codegen_flags: <defaults>
</compile_context>

<pallas_src>
import numpy as np

import jax
import jax.numpy as jnp
from jax.experimental import pallas as pl
from jax.experimental.pallas import tpu as pltpu


HPARAMS = dict(
    input_dim=4,              # input channels
    output_dim=10,
    hidden_layers_size=32,
    activation="relu",
    kernel_size_conv=[3, 3],
    kernel_size_pool=[2, 2],
    stride_conv=[1, 1],
    stride_pool=[2, 2],
    filters=[8, 16],
    batch_normalization=False,
    dropout_rate=0.0,         # eval mode -> dropout is identity
)


# ----------------------------------------------------------------------------
# Fused Pallas kernel: the entire forward pass, VMEM resident, 2D matmuls only.
#
# Activation layout used throughout the kernel ("2D NHWC"):
#     A[n*H + h, w*C + c]  ==  activation[n, c, h, w]   (torch NCHW view)
# ----------------------------------------------------------------------------
def _audio_model_kernel(x_ref,
                        s1_ref, w1_ref, b1_ref, r1_ref, g1_ref,
                        s2_ref, w2_ref, b2_ref, r2_ref, g2_ref,
                        selh_ref, f1_ref, fb1_ref,
                        f2_ref, fb2_ref, f3_ref, fb3_ref,
                        o_ref):
    def dot(a, b):
        return jnp.dot(a, b, preferred_element_type=jnp.float32)

    def conv_relu(a, s_ref, w_ref, b_ref):
        # Banded-weight convolution:
        #   out = relu( sum_di (S_di @ a) @ Wb_di + b )
        # S_di selects input rows h = i*stride + di (per batch element);
        # Wb_di carries the (w, c) -> (w_out, c_out) band for kernel row di.
        acc = None
        for di in range(s_ref.shape[0]):
            t = dot(dot(s_ref[di], a), w_ref[di])
            acc = t if acc is None else acc + t
        return jnp.maximum(acc + b_ref[...], 0.0)

    def maxpool(a, r_ref, g_ref):
        # Row window: selection matmuls pick rows p*stride + a, elementwise max.
        v = dot(r_ref[0], a)
        for aa in range(1, r_ref.shape[0]):
            v = jnp.maximum(v, dot(r_ref[aa], a))
        # Column window: selection matmuls pick column blocks q*stride + b.
        p = dot(v, g_ref[0])
        for bb in range(1, g_ref.shape[0]):
            p = jnp.maximum(p, dot(v, g_ref[bb]))
        return p

    x = x_ref[...]                                   # (N*H, W*C0)

    c1 = conv_relu(x, s1_ref, w1_ref, b1_ref)        # (N*Ho1, Wo1*F1)
    p1 = maxpool(c1, r1_ref, g1_ref)                 # (N*Hp1, Wp1*F1)
    c2 = conv_relu(p1, s2_ref, w2_ref, b2_ref)       # (N*Ho2, Wo2*F2)
    p2 = maxpool(c2, r2_ref, g2_ref)                 # (N*Hp2, Wp2*F2)

    # Flatten (torch C-outer order is folded into the f1 weight blocks) + FC1 + ReLU.
    h1 = None
    for hh in range(selh_ref.shape[0]):
        t = dot(dot(selh_ref[hh], p2), f1_ref[hh])   # (N, hidden)
        h1 = t if h1 is None else h1 + t
    h1 = jnp.maximum(h1 + fb1_ref[...], 0.0)

    # FC2 + ReLU, FC3 (dropout layers are identity in eval mode).
    h2 = jnp.maximum(dot(h1, f2_ref[...]) + fb2_ref[...], 0.0)
    o_ref[...] = (dot(h2, f3_ref[...]) + fb3_ref[...]).astype(o_ref.dtype)


def audio_model_forward(packed, x_nchw):
    """x_nchw: (N, C, H, W) float32 -> logits (N, output_dim)."""
    N, C, H, W = x_nchw.shape
    # One-time input layout conversion: NCHW -> 2D [n*H + h, w*C + c].
    x2d = jnp.transpose(x_nchw, (0, 2, 3, 1)).reshape(N * H, W * C)
    out_dim = packed["fb3"].shape[-1]

    args = (x2d,
            packed["s1"], packed["w1"], packed["b1"], packed["r1"], packed["g1"],
            packed["s2"], packed["w2"], packed["b2"], packed["r2"], packed["g2"],
            packed["selh"], packed["f1"], packed["fb1"],
            packed["f2"], packed["fb2"], packed["f3"], packed["fb3"])

    vmem = pltpu.MemorySpace.VMEM
    return pl.pallas_call(
        _audio_model_kernel,
        out_shape=jax.ShapeDtypeStruct((N, out_dim), jnp.float32),
        in_specs=[pl.BlockSpec(memory_space=vmem) for _ in args],
        out_specs=pl.BlockSpec(memory_space=vmem),
    )(*args)


# ----------------------------------------------------------------------------
# One-time host-side packing of weights into banded / selection matrices.
# ----------------------------------------------------------------------------
def _row_select(n_batch, rows_in, rows_out, stride, offsets):
    """S[t, n*rows_out + i, n*rows_in + i*stride + offsets[t]] = 1."""
    S = np.zeros((len(offsets), n_batch * rows_out, n_batch * rows_in), np.float32)
    for t, off in enumerate(offsets):
        for n in range(n_batch):
            for i in range(rows_out):
                S[t, n * rows_out + i, n * rows_in + i * stride + off] = 1.0
    return S


def _col_select(w_in, w_out, chans, stride, offsets):
    """G[t, (j*stride+off)*chans + c, j*chans + c] = 1 (channel-identity blocks)."""
    G = np.zeros((len(offsets), w_in * chans, w_out * chans), np.float32)
    eye = np.eye(chans, dtype=np.float32)
    for t, off in enumerate(offsets):
        for j in range(w_out):
            src = j * stride + off
            G[t, src * chans:(src + 1) * chans, j * chans:(j + 1) * chans] = eye
    return G


def _conv_banded_weights(w, b, w_in, stride):
    """Torch conv weight (O, Cin, k, k) -> per-kernel-row banded matmul weights.

    Wb[di, (j*stride+dj)*Cin + c, j*O + o] = w[o, c, di, dj];  Bb[0, j*O + o] = b[o].
    """
    O, Cin, k, _ = w.shape
    w = np.asarray(w, np.float32)
    Wo = (w_in - k) // stride + 1
    Wb = np.zeros((k, w_in * Cin, Wo * O), np.float32)
    for di in range(k):
        for j in range(Wo):
            for dj in range(k):
                wcol = j * stride + dj
                Wb[di, wcol * Cin:(wcol + 1) * Cin, j * O:(j + 1) * O] = w[:, :, di, dj].T
    Bb = np.tile(np.asarray(b, np.float32)[None, :], (1, Wo))
    return Wb, Bb


def pack_params(params, hp, *, batch, H, W):
    """Pre-pack torch-layout parameters for the fused kernel (one-time host cost)."""
    kc = hp["kernel_size_conv"]; kp = hp["kernel_size_pool"]
    sc = hp["stride_conv"]; sp = hp["stride_pool"]
    f = hp["filters"]; hid = hp["hidden_layers_size"]
    N = batch

    Ho1 = (H - kc[0]) // sc[0] + 1;  Wo1 = (W - kc[0]) // sc[0] + 1
    Hp1 = (Ho1 - kp[0]) // sp[0] + 1; Wp1 = (Wo1 - kp[0]) // sp[0] + 1
    Ho2 = (Hp1 - kc[1]) // sc[1] + 1; Wo2 = (Wp1 - kc[1]) // sc[1] + 1
    Hp2 = (Ho2 - kp[1]) // sp[1] + 1; Wp2 = (Wo2 - kp[1]) // sp[1] + 1

    wb1, bb1 = _conv_banded_weights(params["conv1_w"], params["conv1_b"], W, sc[0])
    wb2, bb2 = _conv_banded_weights(params["conv2_w"], params["conv2_b"], Wp1, sc[1])

    # Flatten selection for FC1: torch flattens NCHW (C outer), our layout is
    # rows=(n, h_pooled), cols=(w_pooled, c); permute fc1_w into per-row blocks.
    fc1_w = np.asarray(params["fc1_w"], np.float32)       # (hid, F2*Hp2*Wp2)
    f1m = (fc1_w.reshape(hid, f[1], Hp2, Wp2)
                 .transpose(2, 3, 1, 0)                    # (Hp2, Wp2, F2, hid)
                 .reshape(Hp2, Wp2 * f[1], hid).copy())
    selh = np.zeros((Hp2, N, N * Hp2), np.float32)
    for p in range(Hp2):
        for n in range(N):
            selh[p, n, n * Hp2 + p] = 1.0

    packed = dict(
        s1=_row_select(N, H, Ho1, sc[0], range(kc[0])), w1=wb1, b1=bb1,
        r1=_row_select(N, Ho1, Hp1, sp[0], range(kp[0])),
        g1=_col_select(Wo1, Wp1, f[0], sp[0], range(kp[0])),
        s2=_row_select(N, Hp1, Ho2, sc[1], range(kc[1])), w2=wb2, b2=bb2,
        r2=_row_select(N, Ho2, Hp2, sp[1], range(kp[1])),
        g2=_col_select(Wo2, Wp2, f[1], sp[1], range(kp[1])),
        selh=selh, f1=f1m,
        fb1=np.asarray(params["fc1_b"], np.float32)[None, :],
        f2=np.asarray(params["fc2_w"], np.float32).T.copy(),
        fb2=np.asarray(params["fc2_b"], np.float32)[None, :],
        f3=np.asarray(params["fc3_w"], np.float32).T.copy(),
        fb3=np.asarray(params["fc3_b"], np.float32)[None, :],
    )
    return {k: jnp.asarray(v) for k, v in packed.items()}


# ----------------------------------------------------------------------------
# Parameter init (torch layouts) and a plain-numpy reference for verification.
# ----------------------------------------------------------------------------
def init_params(key, hp, H=16, W=16):
    ks = jax.random.split(key, 10)
    kc = hp["kernel_size_conv"]; f = hp["filters"]; hid = hp["hidden_layers_size"]

    h = (H - kc[0]) // hp["stride_conv"][0] + 1
    h = (h - hp["kernel_size_pool"][0]) // hp["stride_pool"][0] + 1
    h = (h - kc[1]) // hp["stride_conv"][1] + 1
    h = (h - hp["kernel_size_pool"][1]) // hp["stride_pool"][1] + 1
    w_sp = (W - kc[0]) // hp["stride_conv"][0] + 1
    w_sp = (w_sp - hp["kernel_size_pool"][0]) // hp["stride_pool"][0] + 1
    w_sp = (w_sp - kc[1]) // hp["stride_conv"][1] + 1
    w_sp = (w_sp - hp["kernel_size_pool"][1]) // hp["stride_pool"][1] + 1
    flat = f[1] * h * w_sp

    def n(k, shape, scale=0.1):
        return (scale * jax.random.normal(k, shape)).astype(jnp.float32)

    return dict(
        conv1_w=n(ks[0], (f[0], hp["input_dim"], kc[0], kc[0])),
        conv1_b=n(ks[1], (f[0],)),
        conv2_w=n(ks[2], (f[1], f[0], kc[1], kc[1])),
        conv2_b=n(ks[3], (f[1],)),
        fc1_w=n(ks[4], (hid, flat)), fc1_b=n(ks[5], (hid,)),
        fc2_w=n(ks[6], (hid, hid)), fc2_b=n(ks[7], (hid,)),
        fc3_w=n(ks[8], (hp["output_dim"], hid)), fc3_b=n(ks[9], (hp["output_dim"],)),
    )


def reference_forward(params, x_nchw, hp):
    """Pure-numpy reference mirroring the PyTorch module (eval mode)."""
    x = np.asarray(x_nchw, np.float32)
    sc = hp["stride_conv"]; sp = hp["stride_pool"]; kp = hp["kernel_size_pool"]

    def conv_relu(a, w, b, s):
        w = np.asarray(w, np.float32); b = np.asarray(b, np.float32)
        Nn, Cc, Hh, Ww = a.shape
        O, _, k, _ = w.shape
        Ho = (Hh - k) // s + 1; Wo = (Ww - k) // s + 1
        out = np.zeros((Nn, O, Ho, Wo), np.float32)
        for di in range(k):
            for dj in range(k):
                patch = a[:, :, di:di + s * Ho:s, dj:dj + s * Wo:s]
                out += np.einsum("nchw,oc->nohw", patch, w[:, :, di, dj])
        return np.maximum(out + b[None, :, None, None], 0.0)

    def maxpool(a, k, s):
        Nn, Cc, Hh, Ww = a.shape
        Ho = (Hh - k) // s + 1; Wo = (Ww - k) // s + 1
        out = np.full((Nn, Cc, Ho, Wo), -np.inf, np.float32)
        for di in range(k):
            for dj in range(k):
                out = np.maximum(out, a[:, :, di:di + s * Ho:s, dj:dj + s * Wo:s])
        return out

    a = conv_relu(x, params["conv1_w"], params["conv1_b"], sc[0])
    a = maxpool(a, kp[0], sp[0])
    a = conv_relu(a, params["conv2_w"], params["conv2_b"], sc[1])
    a = maxpool(a, kp[1], sp[1])
    flat = a.reshape(a.shape[0], -1)
    h = np.maximum(flat @ np.asarray(params["fc1_w"]).T + np.asarray(params["fc1_b"]), 0.0)
    h = np.maximum(h @ np.asarray(params["fc2_w"]).T + np.asarray(params["fc2_b"]), 0.0)
    return h @ np.asarray(params["fc3_w"]).T + np.asarray(params["fc3_b"])


if __name__ == "__main__":
    key = jax.random.PRNGKey(0)
    k_x, k_p = jax.random.split(key)

    N, C, H, W = 2, HPARAMS["input_dim"], 16, 16
    x = jax.random.normal(k_x, (N, C, H, W), dtype=jnp.float32)

    params = init_params(k_p, HPARAMS, H=H, W=W)
    packed = pack_params(params, HPARAMS, batch=N, H=H, W=W)

    fwd = jax.jit(audio_model_forward)
    y = jax.block_until_ready(fwd(packed, x))

    assert y.shape == (N, HPARAMS["output_dim"]), y.shape
    assert bool(jnp.all(jnp.isfinite(y)))

    y_ref = reference_forward(params, np.asarray(x), HPARAMS)
    err = float(np.max(np.abs(np.asarray(y) - y_ref)))
    assert err < 1e-2, f"mismatch vs numpy reference: max abs err = {err}"

    print("KERNEL_OK")
</pallas_src>

<mosaic_0001>
module attributes {stable_mosaic.version = 11 : i64} {
  func.func @_audio_model_kernel(%arg0: memref<32x64xf32, #tpu.memory_space<vmem>>, %arg1: memref<3x28x32xf32, #tpu.memory_space<vmem>>, %arg2: memref<3x64x112xf32, #tpu.memory_space<vmem>>, %arg3: memref<1x112xf32, #tpu.memory_space<vmem>>, %arg4: memref<2x14x28xf32, #tpu.memory_space<vmem>>, %arg5: memref<2x112x56xf32, #tpu.memory_space<vmem>>, %arg6: memref<3x10x14xf32, #tpu.memory_space<vmem>>, %arg7: memref<3x56x80xf32, #tpu.memory_space<vmem>>, %arg8: memref<1x80xf32, #tpu.memory_space<vmem>>, %arg9: memref<2x4x10xf32, #tpu.memory_space<vmem>>, %arg10: memref<2x80x32xf32, #tpu.memory_space<vmem>>, %arg11: memref<2x2x4xf32, #tpu.memory_space<vmem>>, %arg12: memref<2x32x32xf32, #tpu.memory_space<vmem>>, %arg13: memref<1x32xf32, #tpu.memory_space<vmem>>, %arg14: memref<32x32xf32, #tpu.memory_space<vmem>>, %arg15: memref<1x32xf32, #tpu.memory_space<vmem>>, %arg16: memref<32x10xf32, #tpu.memory_space<vmem>>, %arg17: memref<1x10xf32, #tpu.memory_space<vmem>>, %arg18: memref<2x10xf32, #tpu.memory_space<vmem>>) attributes {dimension_semantics = [], scalar_prefetch = 0 : i64, scratch_operands = 0 : i64, tpu.core_type = #tpu.core_type<tc>} {
    %c0 = arith.constant 0 : index
    %c0_0 = arith.constant 0 : index
    %0 = vector.load %arg0[%c0, %c0_0] : memref<32x64xf32, #tpu.memory_space<vmem>>, vector<32x64xf32>
    %c0_1 = arith.constant 0 : index
    %c0_2 = arith.constant 0 : index
    %c0_3 = arith.constant 0 : index
    %1 = vector.load %arg1[%c0_1, %c0_2, %c0_3] : memref<3x28x32xf32, #tpu.memory_space<vmem>>, vector<1x28x32xf32>
    %2 = vector.shape_cast %1 : vector<1x28x32xf32> to vector<28x32xf32>
    %cst = arith.constant dense<0.000000e+00> : vector<28x64xf32>
    %3 = tpu.matmul %2, %0, %cst {dimension_numbers = #tpu.dot_dimension_numbers<[1], [0], [0], [1], [0, 0, 1, 1], [], []>} : vector<28x32xf32>, vector<32x64xf32>, vector<28x64xf32> -> vector<28x64xf32>
    %c0_4 = arith.constant 0 : index
    %c0_5 = arith.constant 0 : index
    %c0_6 = arith.constant 0 : index
    %4 = vector.load %arg2[%c0_4, %c0_5, %c0_6] : memref<3x64x112xf32, #tpu.memory_space<vmem>>, vector<1x64x112xf32>
    %5 = vector.shape_cast %4 : vector<1x64x112xf32> to vector<64x112xf32>
    %cst_7 = arith.constant dense<0.000000e+00> : vector<28x112xf32>
    %6 = tpu.matmul %3, %5, %cst_7 {dimension_numbers = #tpu.dot_dimension_numbers<[1], [0], [0], [1], [0, 0, 1, 1], [], []>} : vector<28x64xf32>, vector<64x112xf32>, vector<28x112xf32> -> vector<28x112xf32>
    %c1 = arith.constant 1 : index
    %c0_8 = arith.constant 0 : index
    %c0_9 = arith.constant 0 : index
    %7 = vector.load %arg1[%c1, %c0_8, %c0_9] : memref<3x28x32xf32, #tpu.memory_space<vmem>>, vector<1x28x32xf32>
    %8 = vector.shape_cast %7 : vector<1x28x32xf32> to vector<28x32xf32>
    %cst_10 = arith.constant dense<0.000000e+00> : vector<28x64xf32>
    %9 = tpu.matmul %8, %0, %cst_10 {dimension_numbers = #tpu.dot_dimension_numbers<[1], [0], [0], [1], [0, 0, 1, 1], [], []>} : vector<28x32xf32>, vector<32x64xf32>, vector<28x64xf32> -> vector<28x64xf32>
    %c1_11 = arith.constant 1 : index
    %c0_12 = arith.constant 0 : index
    %c0_13 = arith.constant 0 : index
    %10 = vector.load %arg2[%c1_11, %c0_12, %c0_13] : memref<3x64x112xf32, #tpu.memory_space<vmem>>, vector<1x64x112xf32>
    %11 = vector.shape_cast %10 : vector<1x64x112xf32> to vector<64x112xf32>
    %cst_14 = arith.constant dense<0.000000e+00> : vector<28x112xf32>
    %12 = tpu.matmul %9, %11, %cst_14 {dimension_numbers = #tpu.dot_dimension_numbers<[1], [0], [0], [1], [0, 0, 1, 1], [], []>} : vector<28x64xf32>, vector<64x112xf32>, vector<28x112xf32> -> vector<28x112xf32>
    %13 = arith.addf %6, %12 : vector<28x112xf32>
    %c2 = arith.constant 2 : index
    %c0_15 = arith.constant 0 : index
    %c0_16 = arith.constant 0 : index
    %14 = vector.load %arg1[%c2, %c0_15, %c0_16] : memref<3x28x32xf32, #tpu.memory_space<vmem>>, vector<1x28x32xf32>
    %15 = vector.shape_cast %14 : vector<1x28x32xf32> to vector<28x32xf32>
    %cst_17 = arith.constant dense<0.000000e+00> : vector<28x64xf32>
    %16 = tpu.matmul %15, %0, %cst_17 {dimension_numbers = #tpu.dot_dimension_numbers<[1], [0], [0], [1], [0, 0, 1, 1], [], []>} : vector<28x32xf32>, vector<32x64xf32>, vector<28x64xf32> -> vector<28x64xf32>
    %c2_18 = arith.constant 2 : index
    %c0_19 = arith.constant 0 : index
    %c0_20 = arith.constant 0 : index
    %17 = vector.load %arg2[%c2_18, %c0_19, %c0_20] : memref<3x64x112xf32, #tpu.memory_space<vmem>>, vector<1x64x112xf32>
    %18 = vector.shape_cast %17 : vector<1x64x112xf32> to vector<64x112xf32>
    %cst_21 = arith.constant dense<0.000000e+00> : vector<28x112xf32>
    %19 = tpu.matmul %16, %18, %cst_21 {dimension_numbers = #tpu.dot_dimension_numbers<[1], [0], [0], [1], [0, 0, 1, 1], [], []>} : vector<28x64xf32>, vector<64x112xf32>, vector<28x112xf32> -> vector<28x112xf32>
    %20 = arith.addf %13, %19 : vector<28x112xf32>
    %c0_22 = arith.constant 0 : index
    %c0_23 = arith.constant 0 : index
    %21 = vector.load %arg3[%c0_22, %c0_23] : memref<1x112xf32, #tpu.memory_space<vmem>>, vector<1x112xf32>
    %22 = vector.broadcast %21 : vector<1x112xf32> to vector<28x112xf32>
    %23 = arith.addf %20, %22 : vector<28x112xf32>
    %cst_24 = arith.constant 0.000000e+00 : f32
    %24 = vector.broadcast %cst_24 : f32 to vector<28x112xf32>
    %25 = arith.maximumf %23, %24 : vector<28x112xf32>
    %c0_25 = arith.constant 0 : index
    %c0_26 = arith.constant 0 : index
    %c0_27 = arith.constant 0 : index
    %26 = vector.load %arg4[%c0_25, %c0_26, %c0_27] : memref<2x14x28xf32, #tpu.memory_space<vmem>>, vector<1x14x28xf32>
    %27 = vector.shape_cast %26 : vector<1x14x28xf32> to vector<14x28xf32>
    %cst_28 = arith.constant dense<0.000000e+00> : vector<14x112xf32>
    %28 = tpu.matmul %27, %25, %cst_28 {dimension_numbers = #tpu.dot_dimension_numbers<[1], [0], [0], [1], [0, 0, 1, 1], [], []>} : vector<14x28xf32>, vector<28x112xf32>, vector<14x112xf32> -> vector<14x112xf32>
    %c1_29 = arith.constant 1 : index
    %c0_30 = arith.constant 0 : index
    %c0_31 = arith.constant 0 : index
    %29 = vector.load %arg4[%c1_29, %c0_30, %c0_31] : memref<2x14x28xf32, #tpu.memory_space<vmem>>, vector<1x14x28xf32>
    %30 = vector.shape_cast %29 : vector<1x14x28xf32> to vector<14x28xf32>
    %cst_32 = arith.constant dense<0.000000e+00> : vector<14x112xf32>
    %31 = tpu.matmul %30, %25, %cst_32 {dimension_numbers = #tpu.dot_dimension_numbers<[1], [0], [0], [1], [0, 0, 1, 1], [], []>} : vector<14x28xf32>, vector<28x112xf32>, vector<14x112xf32> -> vector<14x112xf32>
    %32 = arith.maximumf %28, %31 : vector<14x112xf32>
    %c0_33 = arith.constant 0 : index
    %c0_34 = arith.constant 0 : index
    %c0_35 = arith.constant 0 : index
    %33 = vector.load %arg5[%c0_33, %c0_34, %c0_35] : memref<2x112x56xf32, #tpu.memory_space<vmem>>, vector<1x112x56xf32>
    %34 = vector.shape_cast %33 : vector<1x112x56xf32> to vector<112x56xf32>
    %cst_36 = arith.constant dense<0.000000e+00> : vector<14x56xf32>
    %35 = tpu.matmul %32, %34, %cst_36 {dimension_numbers = #tpu.dot_dimension_numbers<[1], [0], [0], [1], [0, 0, 1, 1], [], []>} : vector<14x112xf32>, vector<112x56xf32>, vector<14x56xf32> -> vector<14x56xf32>
    %c1_37 = arith.constant 1 : index
    %c0_38 = arith.constant 0 : index
    %c0_39 = arith.constant 0 : index
    %36 = vector.load %arg5[%c1_37, %c0_38, %c0_39] : memref<2x112x56xf32, #tpu.memory_space<vmem>>, vector<1x112x56xf32>
    %37 = vector.shape_cast %36 : vector<1x112x56xf32> to vector<112x56xf32>
    %cst_40 = arith.constant dense<0.000000e+00> : vector<14x56xf32>
    %38 = tpu.matmul %32, %37, %cst_40 {dimension_numbers = #tpu.dot_dimension_numbers<[1], [0], [0], [1], [0, 0, 1, 1], [], []>} : vector<14x112xf32>, vector<112x56xf32>, vector<14x56xf32> -> vector<14x56xf32>
    %39 = arith.maximumf %35, %38 : vector<14x56xf32>
    %c0_41 = arith.constant 0 : index
    %c0_42 = arith.constant 0 : index
    %c0_43 = arith.constant 0 : index
    %40 = vector.load %arg6[%c0_41, %c0_42, %c0_43] : memref<3x10x14xf32, #tpu.memory_space<vmem>>, vector<1x10x14xf32>
    %41 = vector.shape_cast %40 : vector<1x10x14xf32> to vector<10x14xf32>
    %cst_44 = arith.constant dense<0.000000e+00> : vector<10x56xf32>
    %42 = tpu.matmul %41, %39, %cst_44 {dimension_numbers = #tpu.dot_dimension_numbers<[1], [0], [0], [1], [0, 0, 1, 1], [], []>} : vector<10x14xf32>, vector<14x56xf32>, vector<10x56xf32> -> vector<10x56xf32>
    %c0_45 = arith.constant 0 : index
    %c0_46 = arith.constant 0 : index
    %c0_47 = arith.constant 0 : index
    %43 = vector.load %arg7[%c0_45, %c0_46, %c0_47] : memref<3x56x80xf32, #tpu.memory_space<vmem>>, vector<1x56x80xf32>
    %44 = vector.shape_cast %43 : vector<1x56x80xf32> to vector<56x80xf32>
    %cst_48 = arith.constant dense<0.000000e+00> : vector<10x80xf32>
    %45 = tpu.matmul %42, %44, %cst_48 {dimension_numbers = #tpu.dot_dimension_numbers<[1], [0], [0], [1], [0, 0, 1, 1], [], []>} : vector<10x56xf32>, vector<56x80xf32>, vector<10x80xf32> -> vector<10x80xf32>
    %c1_49 = arith.constant 1 : index
    %c0_50 = arith.constant 0 : index
    %c0_51 = arith.constant 0 : index
    %46 = vector.load %arg6[%c1_49, %c0_50, %c0_51] : memref<3x10x14xf32, #tpu.memory_space<vmem>>, vector<1x10x14xf32>
    %47 = vector.shape_cast %46 : vector<1x10x14xf32> to vector<10x14xf32>
    %cst_52 = arith.constant dense<0.000000e+00> : vector<10x56xf32>
    %48 = tpu.matmul %47, %39, %cst_52 {dimension_numbers = #tpu.dot_dimension_numbers<[1], [0], [0], [1], [0, 0, 1, 1], [], []>} : vector<10x14xf32>, vector<14x56xf32>, vector<10x56xf32> -> vector<10x56xf32>
    %c1_53 = arith.constant 1 : index
    %c0_54 = arith.constant 0 : index
    %c0_55 = arith.constant 0 : index
    %49 = vector.load %arg7[%c1_53, %c0_54, %c0_55] : memref<3x56x80xf32, #tpu.memory_space<vmem>>, vector<1x56x80xf32>
    %50 = vector.shape_cast %49 : vector<1x56x80xf32> to vector<56x80xf32>
    %cst_56 = arith.constant dense<0.000000e+00> : vector<10x80xf32>
    %51 = tpu.matmul %48, %50, %cst_56 {dimension_numbers = #tpu.dot_dimension_numbers<[1], [0], [0], [1], [0, 0, 1, 1], [], []>} : vector<10x56xf32>, vector<56x80xf32>, vector<10x80xf32> -> vector<10x80xf32>
    %52 = arith.addf %45, %51 : vector<10x80xf32>
    %c2_57 = arith.constant 2 : index
    %c0_58 = arith.constant 0 : index
    %c0_59 = arith.constant 0 : index
    %53 = vector.load %arg6[%c2_57, %c0_58, %c0_59] : memref<3x10x14xf32, #tpu.memory_space<vmem>>, vector<1x10x14xf32>
    %54 = vector.shape_cast %53 : vector<1x10x14xf32> to vector<10x14xf32>
    %cst_60 = arith.constant dense<0.000000e+00> : vector<10x56xf32>
    %55 = tpu.matmul %54, %39, %cst_60 {dimension_numbers = #tpu.dot_dimension_numbers<[1], [0], [0], [1], [0, 0, 1, 1], [], []>} : vector<10x14xf32>, vector<14x56xf32>, vector<10x56xf32> -> vector<10x56xf32>
    %c2_61 = arith.constant 2 : index
    %c0_62 = arith.constant 0 : index
    %c0_63 = arith.constant 0 : index
    %56 = vector.load %arg7[%c2_61, %c0_62, %c0_63] : memref<3x56x80xf32, #tpu.memory_space<vmem>>, vector<1x56x80xf32>
    %57 = vector.shape_cast %56 : vector<1x56x80xf32> to vector<56x80xf32>
    %cst_64 = arith.constant dense<0.000000e+00> : vector<10x80xf32>
    %58 = tpu.matmul %55, %57, %cst_64 {dimension_numbers = #tpu.dot_dimension_numbers<[1], [0], [0], [1], [0, 0, 1, 1], [], []>} : vector<10x56xf32>, vector<56x80xf32>, vector<10x80xf32> -> vector<10x80xf32>
    %59 = arith.addf %52, %58 : vector<10x80xf32>
    %c0_65 = arith.constant 0 : index
    %c0_66 = arith.constant 0 : index
    %60 = vector.load %arg8[%c0_65, %c0_66] : memref<1x80xf32, #tpu.memory_space<vmem>>, vector<1x80xf32>
    %61 = vector.broadcast %60 : vector<1x80xf32> to vector<10x80xf32>
    %62 = arith.addf %59, %61 : vector<10x80xf32>
    %cst_67 = arith.constant 0.000000e+00 : f32
    %63 = vector.broadcast %cst_67 : f32 to vector<10x80xf32>
    %64 = arith.maximumf %62, %63 : vector<10x80xf32>
    %c0_68 = arith.constant 0 : index
    %c0_69 = arith.constant 0 : index
    %c0_70 = arith.constant 0 : index
    %65 = vector.load %arg9[%c0_68, %c0_69, %c0_70] : memref<2x4x10xf32, #tpu.memory_space<vmem>>, vector<1x4x10xf32>
    %66 = vector.shape_cast %65 : vector<1x4x10xf32> to vector<4x10xf32>
    %cst_71 = arith.constant dense<0.000000e+00> : vector<4x80xf32>
    %67 = tpu.matmul %66, %64, %cst_71 {dimension_numbers = #tpu.dot_dimension_numbers<[1], [0], [0], [1], [0, 0, 1, 1], [], []>} : vector<4x10xf32>, vector<10x80xf32>, vector<4x80xf32> -> vector<4x80xf32>
    %c1_72 = arith.constant 1 : index
    %c0_73 = arith.constant 0 : index
    %c0_74 = arith.constant 0 : index
    %68 = vector.load %arg9[%c1_72, %c0_73, %c0_74] : memref<2x4x10xf32, #tpu.memory_space<vmem>>, vector<1x4x10xf32>
    %69 = vector.shape_cast %68 : vector<1x4x10xf32> to vector<4x10xf32>
    %cst_75 = arith.constant dense<0.000000e+00> : vector<4x80xf32>
    %70 = tpu.matmul %69, %64, %cst_75 {dimension_numbers = #tpu.dot_dimension_numbers<[1], [0], [0], [1], [0, 0, 1, 1], [], []>} : vector<4x10xf32>, vector<10x80xf32>, vector<4x80xf32> -> vector<4x80xf32>
    %71 = arith.maximumf %67, %70 : vector<4x80xf32>
    %c0_76 = arith.constant 0 : index
    %c0_77 = arith.constant 0 : index
    %c0_78 = arith.constant 0 : index
    %72 = vector.load %arg10[%c0_76, %c0_77, %c0_78] : memref<2x80x32xf32, #tpu.memory_space<vmem>>, vector<1x80x32xf32>
    %73 = vector.shape_cast %72 : vector<1x80x32xf32> to vector<80x32xf32>
    %cst_79 = arith.constant dense<0.000000e+00> : vector<4x32xf32>
    %74 = tpu.matmul %71, %73, %cst_79 {dimension_numbers = #tpu.dot_dimension_numbers<[1], [0], [0], [1], [0, 0, 1, 1], [], []>} : vector<4x80xf32>, vector<80x32xf32>, vector<4x32xf32> -> vector<4x32xf32>
    %c1_80 = arith.constant 1 : index
    %c0_81 = arith.constant 0 : index
    %c0_82 = arith.constant 0 : index
    %75 = vector.load %arg10[%c1_80, %c0_81, %c0_82] : memref<2x80x32xf32, #tpu.memory_space<vmem>>, vector<1x80x32xf32>
    %76 = vector.shape_cast %75 : vector<1x80x32xf32> to vector<80x32xf32>
    %cst_83 = arith.constant dense<0.000000e+00> : vector<4x32xf32>
    %77 = tpu.matmul %71, %76, %cst_83 {dimension_numbers = #tpu.dot_dimension_numbers<[1], [0], [0], [1], [0, 0, 1, 1], [], []>} : vector<4x80xf32>, vector<80x32xf32>, vector<4x32xf32> -> vector<4x32xf32>
    %78 = arith.maximumf %74, %77 : vector<4x32xf32>
    %c0_84 = arith.constant 0 : index
    %c0_85 = arith.constant 0 : index
    %c0_86 = arith.constant 0 : index
    %79 = vector.load %arg11[%c0_84, %c0_85, %c0_86] : memref<2x2x4xf32, #tpu.memory_space<vmem>>, vector<1x2x4xf32>
    %80 = vector.shape_cast %79 : vector<1x2x4xf32> to vector<2x4xf32>
    %cst_87 = arith.constant dense<0.000000e+00> : vector<2x32xf32>
    %81 = tpu.matmul %80, %78, %cst_87 {dimension_numbers = #tpu.dot_dimension_numbers<[1], [0], [0], [1], [0, 0, 1, 1], [], []>} : vector<2x4xf32>, vector<4x32xf32>, vector<2x32xf32> -> vector<2x32xf32>
    %c0_88 = arith.constant 0 : index
    %c0_89 = arith.constant 0 : index
    %c0_90 = arith.constant 0 : index
    %82 = vector.load %arg12[%c0_88, %c0_89, %c0_90] : memref<2x32x32xf32, #tpu.memory_space<vmem>>, vector<1x32x32xf32>
    %83 = vector.shape_cast %82 : vector<1x32x32xf32> to vector<32x32xf32>
    %cst_91 = arith.constant dense<0.000000e+00> : vector<2x32xf32>
    %84 = tpu.matmul %81, %83, %cst_91 {dimension_numbers = #tpu.dot_dimension_numbers<[1], [0], [0], [1], [0, 0, 1, 1], [], []>} : vector<2x32xf32>, vector<32x32xf32>, vector<2x32xf32> -> vector<2x32xf32>
    %c1_92 = arith.constant 1 : index
    %c0_93 = arith.constant 0 : index
    %c0_94 = arith.constant 0 : index
    %85 = vector.load %arg11[%c1_92, %c0_93, %c0_94] : memref<2x2x4xf32, #tpu.memory_space<vmem>>, vector<1x2x4xf32>
    %86 = vector.shape_cast %85 : vector<1x2x4xf32> to vector<2x4xf32>
    %cst_95 = arith.constant dense<0.000000e+00> : vector<2x32xf32>
    %87 = tpu.matmul %86, %78, %cst_95 {dimension_numbers = #tpu.dot_dimension_numbers<[1], [0], [0], [1], [0, 0, 1, 1], [], []>} : vector<2x4xf32>, vector<4x32xf32>, vector<2x32xf32> -> vector<2x32xf32>
    %c1_96 = arith.constant 1 : index
    %c0_97 = arith.constant 0 : index
    %c0_98 = arith.constant 0 : index
    %88 = vector.load %arg12[%c1_96, %c0_97, %c0_98] : memref<2x32x32xf32, #tpu.memory_space<vmem>>, vector<1x32x32xf32>
    %89 = vector.shape_cast %88 : vector<1x32x32xf32> to vector<32x32xf32>
    %cst_99 = arith.constant dense<0.000000e+00> : vector<2x32xf32>
    %90 = tpu.matmul %87, %89, %cst_99 {dimension_numbers = #tpu.dot_dimension_numbers<[1], [0], [0], [1], [0, 0, 1, 1], [], []>} : vector<2x32xf32>, vector<32x32xf32>, vector<2x32xf32> -> vector<2x32xf32>
    %91 = arith.addf %84, %90 : vector<2x32xf32>
    %c0_100 = arith.constant 0 : index
    %c0_101 = arith.constant 0 : index
    %92 = vector.load %arg13[%c0_100, %c0_101] : memref<1x32xf32, #tpu.memory_space<vmem>>, vector<1x32xf32>
    %93 = vector.broadcast %92 : vector<1x32xf32> to vector<2x32xf32>
    %94 = arith.addf %91, %93 : vector<2x32xf32>
    %cst_102 = arith.constant 0.000000e+00 : f32
    %95 = vector.broadcast %cst_102 : f32 to vector<2x32xf32>
    %96 = arith.maximumf %94, %95 : vector<2x32xf32>
    %c0_103 = arith.constant 0 : index
    %c0_104 = arith.constant 0 : index
    %97 = vector.load %arg14[%c0_103, %c0_104] : memref<32x32xf32, #tpu.memory_space<vmem>>, vector<32x32xf32>
    %cst_105 = arith.constant dense<0.000000e+00> : vector<2x32xf32>
    %98 = tpu.matmul %96, %97, %cst_105 {dimension_numbers = #tpu.dot_dimension_numbers<[1], [0], [0], [1], [0, 0, 1, 1], [], []>} : vector<2x32xf32>, vector<32x32xf32>, vector<2x32xf32> -> vector<2x32xf32>
    %c0_106 = arith.constant 0 : index
    %c0_107 = arith.constant 0 : index
    %99 = vector.load %arg15[%c0_106, %c0_107] : memref<1x32xf32, #tpu.memory_space<vmem>>, vector<1x32xf32>
    %100 = vector.broadcast %99 : vector<1x32xf32> to vector<2x32xf32>
    %101 = arith.addf %98, %100 : vector<2x32xf32>
    %cst_108 = arith.constant 0.000000e+00 : f32
    %102 = vector.broadcast %cst_108 : f32 to vector<2x32xf32>
    %103 = arith.maximumf %101, %102 : vector<2x32xf32>
    %c0_109 = arith.constant 0 : index
    %c0_110 = arith.constant 0 : index
    %104 = vector.load %arg16[%c0_109, %c0_110] : memref<32x10xf32, #tpu.memory_space<vmem>>, vector<32x10xf32>
    %cst_111 = arith.constant dense<0.000000e+00> : vector<2x10xf32>
    %105 = tpu.matmul %103, %104, %cst_111 {dimension_numbers = #tpu.dot_dimension_numbers<[1], [0], [0], [1], [0, 0, 1, 1], [], []>} : vector<2x32xf32>, vector<32x10xf32>, vector<2x10xf32> -> vector<2x10xf32>
    %c0_112 = arith.constant 0 : index
    %c0_113 = arith.constant 0 : index
    %106 = vector.load %arg17[%c0_112, %c0_113] : memref<1x10xf32, #tpu.memory_space<vmem>>, vector<1x10xf32>
    %107 = vector.broadcast %106 : vector<1x10xf32> to vector<2x10xf32>
    %108 = arith.addf %105, %107 : vector<2x10xf32>
    %c0_114 = arith.constant 0 : index
    %c0_115 = arith.constant 0 : index
    %109 = vector.load %arg18[%c0_114, %c0_115] : memref<2x10xf32, #tpu.memory_space<vmem>>, vector<2x10xf32>
    tpu.vector_store %arg18[%c0_114, %c0_115], %108 {strides = array<i32>} : memref<2x10xf32, #tpu.memory_space<vmem>>, vector<2x10xf32>,
    return
  }
}

</mosaic_0001>

<llo_original>
// kernel: audio_model_forward.1
$region0: #{audio_model_forward.1}
  #allocation0 [shape = 'u32[]', space=smem, size = 0x4, offset = 0x4, fixed_abs, tag = 'smem constant byte address 0x4 - core index']
  #allocation1 [shape = 'u32[72,128]{1,0:T(1,128)}', space=vmem, size = 0x9000, scoped, tag = 'internal scratch']
  %s0 = inlined_call_operand.vmem [shape: f32[32,64], index: 0, kind: input, shape index: {}]
  %s1 = inlined_call_operand.vmem [shape: f32[3,28,32], index: 1, kind: input, shape index: {}]
  %s2 = inlined_call_operand.vmem [shape: f32[3,64,112], index: 2, kind: input, shape index: {}]
  %s3 = inlined_call_operand.vmem [shape: f32[1,112], index: 3, kind: input, shape index: {}]
  %s4 = inlined_call_operand.vmem [shape: f32[2,14,28], index: 4, kind: input, shape index: {}]
  %s5 = inlined_call_operand.vmem [shape: f32[2,112,56], index: 5, kind: input, shape index: {}]
  %s6 = inlined_call_operand.vmem [shape: f32[3,10,14], index: 6, kind: input, shape index: {}]
  %s7 = inlined_call_operand.vmem [shape: f32[3,56,80], index: 7, kind: input, shape index: {}]
  %s8 = inlined_call_operand.vmem [shape: f32[1,80], index: 8, kind: input, shape index: {}]
  %s9 = inlined_call_operand.vmem [shape: f32[2,4,10], index: 9, kind: input, shape index: {}]
  %s10 = inlined_call_operand.vmem [shape: f32[2,80,32], index: 10, kind: input, shape index: {}]
  %s11 = inlined_call_operand.vmem [shape: f32[2,2,4], index: 11, kind: input, shape index: {}]
  %s12 = inlined_call_operand.vmem [shape: f32[2,32,32], index: 12, kind: input, shape index: {}]
  %s13 = inlined_call_operand.vmem [shape: f32[1,32], index: 13, kind: input, shape index: {}]
  %s14 = inlined_call_operand.vmem [shape: f32[32,32], index: 14, kind: input, shape index: {}]
  %s15 = inlined_call_operand.vmem [shape: f32[1,32], index: 15, kind: input, shape index: {}]
  %s16 = inlined_call_operand.vmem [shape: f32[32,10], index: 16, kind: input, shape index: {}]
  %s17 = inlined_call_operand.vmem [shape: f32[1,10], index: 17, kind: input, shape index: {}]
  %s18 = inlined_call_operand.hbm [shape: f32[2,10], index: 18, kind: output, shape index: {}]
  %s19 = sld [smem:[#allocation0]]
  $region82: #{audio_model_forward.1} parent=0
    _
  %s21 = ssub.s32 1, %s19
  %s22 = scalar_select 0, %s21, %s19
  $region1: #{audio_model_forward.1} parent=0
    #allocation2 [shape = 'u8[1024]{0}', space=vmem, size = 0x400, scoped, tag = 'output window, operand 0, single buffered']
    #allocation3 [shape = 's32[1]{0}', space=sflag, size = 0x4, scoped, tag = 'scoped memory for audio_model_forward.1']
    %23 = vsyncpa [#allocation3], 0
    // Predicated region
    $region2: #{audio_model_forward.1} parent=1 // pred_check
      _
    $region3: #{audio_model_forward.1} parent=1 // pred_check_branch
      %25 = sbr.rel (0) target = $region5
    $region4: #{audio_model_forward.1} parent=1 // pred_region
      _
    $region5: #{audio_model_forward.1} parent=1 // pred_fallthru
      _
    // Predicated region
    $region6: #{audio_model_forward.1} parent=1 // pred_check
      _
    $region7: #{audio_model_forward.1} parent=1 // pred_check_branch
      %27 = sbr.rel (0) target = $region9
    $region8: #{audio_model_forward.1} parent=1 // pred_region
      _
    $region9: #{audio_model_forward.1} parent=1 // pred_fallthru
      _
    // Predicated region
    $region10: #{audio_model_forward.1} parent=1 // pred_check
      _
    $region11: #{audio_model_forward.1} parent=1 // pred_check_branch
      %29 = sbr.rel (0) target = $region13
    $region12: #{audio_model_forward.1} parent=1 // pred_region
      _
    $region13: #{audio_model_forward.1} parent=1 // pred_fallthru
      _
    // Predicated region
    $region14: #{audio_model_forward.1} parent=1 // pred_check
      _
    $region15: #{audio_model_forward.1} parent=1 // pred_check_branch
      %31 = sbr.rel (0) target = $region17
    $region16: #{audio_model_forward.1} parent=1 // pred_region
      _
    $region17: #{audio_model_forward.1} parent=1 // pred_fallthru
      _
    // Predicated region
    $region18: #{audio_model_forward.1} parent=1 // pred_check
      _
    $region19: #{audio_model_forward.1} parent=1 // pred_check_branch
      %33 = sbr.rel (0) target = $region21
    $region20: #{audio_model_forward.1} parent=1 // pred_region
      _
    $region21: #{audio_model_forward.1} parent=1 // pred_fallthru
      _
    // Predicated region
    $region22: #{audio_model_forward.1} parent=1 // pred_check
      _
    $region23: #{audio_model_forward.1} parent=1 // pred_check_branch
      %35 = sbr.rel (0) target = $region25
    $region24: #{audio_model_forward.1} parent=1 // pred_region
      _
    $region25: #{audio_model_forward.1} parent=1 // pred_fallthru
      _
    // Predicated region
    $region26: #{audio_model_forward.1} parent=1 // pred_check
      _
    $region27: #{audio_model_forward.1} parent=1 // pred_check_branch
      %37 = sbr.rel (0) target = $region29
    $region28: #{audio_model_forward.1} parent=1 // pred_region
      _
    $region29: #{audio_model_forward.1} parent=1 // pred_fallthru
      _
    // Predicated region
    $region30: #{audio_model_forward.1} parent=1 // pred_check
      _
    $region31: #{audio_model_forward.1} parent=1 // pred_check_branch
      %39 = sbr.rel (0) target = $region33
    $region32: #{audio_model_forward.1} parent=1 // pred_region
      _
    $region33: #{audio_model_forward.1} parent=1 // pred_fallthru
      _
    // Predicated region
    $region34: #{audio_model_forward.1} parent=1 // pred_check
      _
    $region35: #{audio_model_forward.1} parent=1 // pred_check_branch
      %41 = sbr.rel (0) target = $region37
    $region36: #{audio_model_forward.1} parent=1 // pred_region
      _
    $region37: #{audio_model_forward.1} parent=1 // pred_fallthru
      _
    // Predicated region
    $region38: #{audio_model_forward.1} parent=1 // pred_check
      _
    $region39: #{audio_model_forward.1} parent=1 // pred_check_branch
      %43 = sbr.rel (0) target = $region41
    $region40: #{audio_model_forward.1} parent=1 // pred_region
      _
    $region41: #{audio_model_forward.1} parent=1 // pred_fallthru
      _
    // Predicated region
    $region42: #{audio_model_forward.1} parent=1 // pred_check
      _
    $region43: #{audio_model_forward.1} parent=1 // pred_check_branch
      %45 = sbr.rel (0) target = $region45
    $region44: #{audio_model_forward.1} parent=1 // pred_region
      _
    $region45: #{audio_model_forward.1} parent=1 // pred_fallthru
      _
    // Predicated region
    $region46: #{audio_model_forward.1} parent=1 // pred_check
      _
    $region47: #{audio_model_forward.1} parent=1 // pred_check_branch
      %47 = sbr.rel (0) target = $region49
    $region48: #{audio_model_forward.1} parent=1 // pred_region
      _
    $region49: #{audio_model_forward.1} parent=1 // pred_fallthru
      _
    // Predicated region
    $region50: #{audio_model_forward.1} parent=1 // pred_check
      _
    $region51: #{audio_model_forward.1} parent=1 // pred_check_branch
      %49 = sbr.rel (0) target = $region53
    $region52: #{audio_model_forward.1} parent=1 // pred_region
      _
    $region53: #{audio_model_forward.1} parent=1 // pred_fallthru
      _
    // Predicated region
    $region54: #{audio_model_forward.1} parent=1 // pred_check
      _
    $region55: #{audio_model_forward.1} parent=1 // pred_check_branch
      %51 = sbr.rel (0) target = $region57
    $region56: #{audio_model_forward.1} parent=1 // pred_region
      _
    $region57: #{audio_model_forward.1} parent=1 // pred_fallthru
      _
    // Predicated region
    $region58: #{audio_model_forward.1} parent=1 // pred_check
      _
    $region59: #{audio_model_forward.1} parent=1 // pred_check_branch
      %53 = sbr.rel (0) target = $region61
    $region60: #{audio_model_forward.1} parent=1 // pred_region
      _
    $region61: #{audio_model_forward.1} parent=1 // pred_fallthru
      _
    // Predicated region
    $region62: #{audio_model_forward.1} parent=1 // pred_check
      _
    $region63: #{audio_model_forward.1} parent=1 // pred_check_branch
      %55 = sbr.rel (0) target = $region65
    $region64: #{audio_model_forward.1} parent=1 // pred_region
      _
    $region65: #{audio_model_forward.1} parent=1 // pred_fallthru
      _
    // Predicated region
    $region66: #{audio_model_forward.1} parent=1 // pred_check
      _
    $region67: #{audio_model_forward.1} parent=1 // pred_check_branch
      %57 = sbr.rel (0) target = $region69
    $region68: #{audio_model_forward.1} parent=1 // pred_region
      _
    $region69: #{audio_model_forward.1} parent=1 // pred_fallthru
      _
    // Predicated region
    $region70: #{audio_model_forward.1} parent=1 // pred_check
      _
    $region71: #{audio_model_forward.1} parent=1 // pred_check_branch
      %59 = sbr.rel (0) target = $region73
    $region72: #{audio_model_forward.1} parent=1 // pred_region
      _
    $region73: #{audio_model_forward.1} parent=1 // pred_fallthru
      _
    %v60 = vld [vmem:[%s0] sm:$0xff]
    %v61 = vld [vmem:[%s0 + $0x8] sm:$0xff]
    %v62 = vld [vmem:[%s0 + $0x10] sm:$0xff]
    %v63 = vld [vmem:[%s0 + $0x18] sm:$0xff]
    %v64 = vld [vmem:[%s1] sm:$0xff]
    %v65 = vld [vmem:[%s1 + $0x8] sm:$0xff]
    %v66 = vld [vmem:[%s1 + $0x10] sm:$0xff]
    %v67 = vld [vmem:[%s1 + $0x18] sm:$0xf]
    %vm68 = vcmask 261120
    %v70 = vsel %vm68, %v64, 0
    %v73 = vsel %vm68, %v65, 0
    %v76 = vsel %vm68, %v66, 0
    %v79 = vsel %vm68, %v67, 0
    %81 = vmatpush.msra.mxu0 0.0
    %82 = vmatpush.msra.mxu0 0.0
    %83 = vmatpush.msra.mxu0 0.0
    %84 = vmatpush.msra.mxu0 0.0
    %85 = vmatpush.msra.mxu0 0.0
    %86 = vmatpush.msra.mxu0 0.0
    %87 = vmatpush.msra.mxu0 0.0
    %88 = vmatpush.msra.mxu0 0.0
    %89 = vmatpush.msra.mxu0 0.0
    %90 = vmatpush.msra.mxu0 0.0
    %91 = vmatpush.msra.mxu0 0.0
    %92 = vmatpush.msra.mxu0 0.0
    %93 = vmatpush.msra.mxu0 %v63
    %94 = vmatpush.msra.mxu0 %v62
    %95 = vmatpush.msra.mxu0 %v61
    %96 = vmatpush.msra.mxu0 %v60
    %97 = vmatmul.f32.gmra.mxu0 %v70
    %v98 = vpop.f32.mrf.mxu0
    %v99 = vadd.f32 0.0, %v98
    %100 = vmatmul.f32.gmra.mxu0 %v73
    %v101 = vpop.f32.mrf.mxu0
    %v102 = vadd.f32 0.0, %v101
    %103 = vmatmul.f32.gmra.mxu0 %v76
    %v104 = vpop.f32.mrf.mxu0
    %v105 = vadd.f32 0.0, %v104
    %106 = vmatmul.f32.gmra.mxu0 %v79
    %v107 = vpop.f32.mrf.mxu0
    %v108 = vadd.f32 0.0, %v107
    %109 = vdwg.mxu0
    %v110 = vld [vmem:[%s2] sm:$0xff]
    %v111 = vld [vmem:[%s2 + $0x8] sm:$0xff]
    %v112 = vld [vmem:[%s2 + $0x10] sm:$0xff]
    %v113 = vld [vmem:[%s2 + $0x18] sm:$0xff]
    %v114 = vld [vmem:[%s2 + $0x20] sm:$0xff]
    %v115 = vld [vmem:[%s2 + $0x28] sm:$0xff]
    %v116 = vld [vmem:[%s2 + $0x30] sm:$0xff]
    %v117 = vld [vmem:[%s2 + $0x38] sm:$0xff]
    %s118 = scalar_lea.vmem %s1, 32
    %v119 = vld [vmem:[%s118] sm:$0xff]
    %v120 = vld [vmem:[%s118 + $0x8] sm:$0xff]
    %v121 = vld [vmem:[%s118 + $0x10] sm:$0xff]
    %v122 = vld [vmem:[%s118 + $0x18] sm:$0xf]
    %v124 = vsel %vm68, %v119, 0
    %v127 = vsel %vm68, %v120, 0
    %v130 = vsel %vm68, %v121, 0
    %v133 = vsel %vm68, %v122, 0
    %135 = vmatpush.msra.mxu0 0.0
    %136 = vmatpush.msra.mxu0 0.0
    %137 = vmatpush.msra.mxu0 0.0
    %138 = vmatpush.msra.mxu0 0.0
    %139 = vmatpush.msra.mxu0 0.0
    %140 = vmatpush.msra.mxu0 0.0
    %141 = vmatpush.msra.mxu0 0.0
    %142 = vmatpush.msra.mxu0 0.0
    %143 = vmatpush.msra.mxu0 0.0
    %144 = vmatpush.msra.mxu0 0.0
    %145 = vmatpush.msra.mxu0 0.0
    %146 = vmatpush.msra.mxu0 0.0
    %147 = vmatpush.msra.mxu0 %v63
    %148 = vmatpush.msra.mxu0 %v62
    %149 = vmatpush.msra.mxu0 %v61
    %150 = vmatpush.msra.mxu0 %v60
    %151 = vmatmul.f32.gmra.mxu0 %v124
    %v152 = vpop.f32.mrf.mxu0
    %v153 = vadd.f32 0.0, %v152
    %154 = vmatmul.f32.gmra.mxu0 %v127
    %v155 = vpop.f32.mrf.mxu0
    %v156 = vadd.f32 0.0, %v155
    %157 = vmatmul.f32.gmra.mxu0 %v130
    %v158 = vpop.f32.mrf.mxu0
    %v159 = vadd.f32 0.0, %v158
    %160 = vmatmul.f32.gmra.mxu0 %v133
    %v161 = vpop.f32.mrf.mxu0
    %v162 = vadd.f32 0.0, %v161
    %163 = vdwg.mxu0
    %s164 = scalar_lea.vmem %s2, 64
    %v165 = vld [vmem:[%s164] sm:$0xff]
    %v166 = vld [vmem:[%s164 + $0x8] sm:$0xff]
    %v167 = vld [vmem:[%s164 + $0x10] sm:$0xff]
    %v168 = vld [vmem:[%s164 + $0x18] sm:$0xff]
    %v169 = vld [vmem:[%s164 + $0x20] sm:$0xff]
    %v170 = vld [vmem:[%s164 + $0x28] sm:$0xff]
    %v171 = vld [vmem:[%s164 + $0x30] sm:$0xff]
    %v172 = vld [vmem:[%s164 + $0x38] sm:$0xff]
    %vm173 = vcmask 523264
    %v175 = vsel %vm173, %v153, 0
    %v178 = vsel %vm173, %v156, 0
    %v181 = vsel %vm173, %v159, 0
    %v184 = vsel %vm173, %v162, 0
    %186 = vmatpush.msra.mxu0 0.0
    %187 = vmatpush.msra.mxu0 0.0
    %188 = vmatpush.msra.mxu0 0.0
    %189 = vmatpush.msra.mxu0 0.0
    %190 = vmatpush.msra.mxu0 0.0
    %191 = vmatpush.msra.mxu0 0.0
    %192 = vmatpush.msra.mxu0 0.0
    %193 = vmatpush.msra.mxu0 0.0
    %194 = vmatpush.msra.mxu0 %v172
    %195 = vmatpush.msra.mxu0 %v171
    %196 = vmatpush.msra.mxu0 %v170
    %197 = vmatpush.msra.mxu0 %v169
    %198 = vmatpush.msra.mxu0 %v168
    %199 = vmatpush.msra.mxu0 %v167
    %200 = vmatpush.msra.mxu0 %v166
    %201 = vmatpush.msra.mxu0 %v165
    %202 = vmatmul.f32.gmra.mxu0 %v175
    %v203 = vpop.f32.mrf.mxu0
    %v204 = vadd.f32 0.0, %v203
    %205 = vmatmul.f32.gmra.mxu0 %v178
    %v206 = vpop.f32.mrf.mxu0
    %v207 = vadd.f32 0.0, %v206
    %208 = vmatmul.f32.gmra.mxu0 %v181
    %v209 = vpop.f32.mrf.mxu0
    %v210 = vadd.f32 0.0, %v209
    %211 = vmatmul.f32.gmra.mxu0 %v184
    %v212 = vpop.f32.mrf.mxu0
    %v213 = vadd.f32 0.0, %v212
    %214 = vdwg.mxu0
    %v216 = vsel %vm173, %v99, 0
    %v219 = vsel %vm173, %v102, 0
    %v222 = vsel %vm173, %v105, 0
    %v225 = vsel %vm173, %v108, 0
    %227 = vmatpush.msra.mxu0 0.0
    %228 = vmatpush.msra.mxu0 0.0
    %229 = vmatpush.msra.mxu0 0.0
    %230 = vmatpush.msra.mxu0 0.0
    %231 = vmatpush.msra.mxu0 0.0
    %232 = vmatpush.msra.mxu0 0.0
    %233 = vmatpush.msra.mxu0 0.0
    %234 = vmatpush.msra.mxu0 0.0
    %235 = vmatpush.msra.mxu0 %v117
    %236 = vmatpush.msra.mxu0 %v116
    %237 = vmatpush.msra.mxu0 %v115
    %238 = vmatpush.msra.mxu0 %v114
    %239 = vmatpush.msra.mxu0 %v113
    %240 = vmatpush.msra.mxu0 %v112
    %241 = vmatpush.msra.mxu0 %v111
    %242 = vmatpush.msra.mxu0 %v110
    %243 = vmatmul.f32.gmra.mxu0 %v216
    %v244 = vpop.f32.mrf.mxu0
    %v245 = vadd.f32 %v204, %v244
    %246 = vmatmul.f32.gmra.mxu0 %v219
    %v247 = vpop.f32.mrf.mxu0
    %v248 = vadd.f32 %v207, %v247
    %249 = vmatmul.f32.gmra.mxu0 %v222
    %v250 = vpop.f32.mrf.mxu0
    %v251 = vadd.f32 %v210, %v250
    %252 = vmatmul.f32.gmra.mxu0 %v225
    %v253 = vpop.f32.mrf.mxu0
    %v254 = vadd.f32 %v213, %v253
    %255 = vdwg.mxu0
    %s256 = scalar_lea.vmem %s1, 64
    %v257 = vld [vmem:[%s256] sm:$0xff]
    %v258 = vld [vmem:[%s256 + $0x8] sm:$0xff]
    %v259 = vld [vmem:[%s256 + $0x10] sm:$0xff]
    %v260 = vld [vmem:[%s256 + $0x18] sm:$0xf]
    %v262 = vsel %vm68, %v257, 0
    %v265 = vsel %vm68, %v258, 0
    %v268 = vsel %vm68, %v259, 0
    %v271 = vsel %vm68, %v260, 0
    %273 = vmatpush.msra.mxu0 0.0
    %274 = vmatpush.msra.mxu0 0.0
    %275 = vmatpush.msra.mxu0 0.0
    %276 = vmatpush.msra.mxu0 0.0
    %277 = vmatpush.msra.mxu0 0.0
    %278 = vmatpush.msra.mxu0 0.0
    %279 = vmatpush.msra.mxu0 0.0
    %280 = vmatpush.msra.mxu0 0.0
    %281 = vmatpush.msra.mxu0 0.0
    %282 = vmatpush.msra.mxu0 0.0
    %283 = vmatpush.msra.mxu0 0.0
    %284 = vmatpush.msra.mxu0 0.0
    %285 = vmatpush.msra.mxu0 %v63
    %286 = vmatpush.msra.mxu0 %v62
    %287 = vmatpush.msra.mxu0 %v61
    %288 = vmatpush.msra.mxu0 %v60
    %289 = vmatmul.f32.gmra.mxu0 %v262
    %v290 = vpop.f32.mrf.mxu0
    %v291 = vadd.f32 0.0, %v290
    %292 = vmatmul.f32.gmra.mxu0 %v265
    %v293 = vpop.f32.mrf.mxu0
    %v294 = vadd.f32 0.0, %v293
    %295 = vmatmul.f32.gmra.mxu0 %v268
    %v296 = vpop.f32.mrf.mxu0
    %v297 = vadd.f32 0.0, %v296
    %298 = vmatmul.f32.gmra.mxu0 %v271
    %v299 = vpop.f32.mrf.mxu0
    %v300 = vadd.f32 0.0, %v299
    %301 = vdwg.mxu0
    %s302 = scalar_lea.vmem %s2, 128
    %v303 = vld [vmem:[%s302] sm:$0xff]
    %v304 = vld [vmem:[%s302 + $0x8] sm:$0xff]
    %v305 = vld [vmem:[%s302 + $0x10] sm:$0xff]
    %v306 = vld [vmem:[%s302 + $0x18] sm:$0xff]
    %v307 = vld [vmem:[%s302 + $0x20] sm:$0xff]
    %v308 = vld [vmem:[%s302 + $0x28] sm:$0xff]
    %v309 = vld [vmem:[%s302 + $0x30] sm:$0xff]
    %v310 = vld [vmem:[%s302 + $0x38] sm:$0xff]
    %v312 = vsel %vm173, %v291, 0
    %v315 = vsel %vm173, %v294, 0
    %v318 = vsel %vm173, %v297, 0
    %v321 = vsel %vm173, %v300, 0
    %323 = vmatpush.msra.mxu0 0.0
    %324 = vmatpush.msra.mxu0 0.0
    %325 = vmatpush.msra.mxu0 0.0
    %326 = vmatpush.msra.mxu0 0.0
    %327 = vmatpush.msra.mxu0 0.0
    %328 = vmatpush.msra.mxu0 0.0
    %329 = vmatpush.msra.mxu0 0.0
    %330 = vmatpush.msra.mxu0 0.0
    %331 = vmatpush.msra.mxu0 %v310
    %332 = vmatpush.msra.mxu0 %v309
    %333 = vmatpush.msra.mxu0 %v308
    %334 = vmatpush.msra.mxu0 %v307
    %335 = vmatpush.msra.mxu0 %v306
    %336 = vmatpush.msra.mxu0 %v305
    %337 = vmatpush.msra.mxu0 %v304
    %338 = vmatpush.msra.mxu0 %v303
    %339 = vmatmul.f32.gmra.mxu0 %v312
    %v340 = vpop.f32.mrf.mxu0
    %v341 = vadd.f32 0.0, %v340
    %342 = vmatmul.f32.gmra.mxu0 %v315
    %v343 = vpop.f32.mrf.mxu0
    %v344 = vadd.f32 0.0, %v343
    %345 = vmatmul.f32.gmra.mxu0 %v318
    %v346 = vpop.f32.mrf.mxu0
    %v347 = vadd.f32 0.0, %v346
    %348 = vmatmul.f32.gmra.mxu0 %v321
    %v349 = vpop.f32.mrf.mxu0
    %v350 = vadd.f32 0.0, %v349
    %351 = vdwg.mxu0
    %v352 = vadd.f32 %v245, %v341
    %v353 = vadd.f32 %v248, %v344
    %v354 = vadd.f32 %v251, %v347
    %v355 = vadd.f32 %v254, %v350
    %v356 = vld [vmem:[%s3] sm:$0x1]
    %v358 = vperm.slane %v356, 0
    %v360 = vadd.f32 %v352, %v358
    %v361 = vadd.f32 %v353, %v358
    %v362 = vadd.f32 %v354, %v358
    %v363 = vadd.f32 %v355, %v358
    %v364 = vmax.f32 %v360, 0.0
    %v365 = vmax.f32 %v361, 0.0
    %v366 = vmax.f32 %v362, 0.0
    %v367 = vmax.f32 %v363, 0.0
    %v368 = vld [vmem:[%s4] sm:$0xff]
    %v369 = vld [vmem:[%s4 + $0x8] sm:$0x3f]
    %vm370 = vcmask 228352
    %v372 = vsel %vm370, %v368, 0
    %v375 = vsel %vm370, %v369, 0
    %vm377 = vcmask 1043456
    %v379 = vsel %vm377, %v367, 0
    %381 = vmatpush.msra.mxu0 0.0
    %382 = vmatpush.msra.mxu0 0.0
    %383 = vmatpush.msra.mxu0 0.0
    %384 = vmatpush.msra.mxu0 0.0
    %385 = vmatpush.msra.mxu0 0.0
    %386 = vmatpush.msra.mxu0 0.0
    %387 = vmatpush.msra.mxu0 0.0
    %388 = vmatpush.msra.mxu0 0.0
    %389 = vmatpush.msra.mxu0 0.0
    %390 = vmatpush.msra.mxu0 0.0
    %391 = vmatpush.msra.mxu0 0.0
    %392 = vmatpush.msra.mxu0 0.0
    %393 = vmatpush.msra.mxu0 %v379
    %394 = vmatpush.msra.mxu0 %v366
    %395 = vmatpush.msra.mxu0 %v365
    %396 = vmatpush.msra.mxu0 %v364
    %397 = vmatmul.f32.gmra.mxu0 %v372
    %v398 = vpop.f32.mrf.mxu0
    %v399 = vadd.f32 0.0, %v398
    %400 = vmatmul.f32.gmra.mxu0 %v375
    %v401 = vpop.f32.mrf.mxu0
    %v402 = vadd.f32 0.0, %v401
    %403 = vdwg.mxu0
    %s404 = scalar_lea.vmem %s4, 16
    %v405 = vld [vmem:[%s404] sm:$0xff]
    %v406 = vld [vmem:[%s404 + $0x8] sm:$0x3f]
    %v408 = vsel %vm370, %v405, 0
    %v411 = vsel %vm370, %v406, 0
    %413 = vmatpush.msra.mxu0 0.0
    %414 = vmatpush.msra.mxu0 0.0
    %415 = vmatpush.msra.mxu0 0.0
    %416 = vmatpush.msra.mxu0 0.0
    %417 = vmatpush.msra.mxu0 0.0
    %418 = vmatpush.msra.mxu0 0.0
    %419 = vmatpush.msra.mxu0 0.0
    %420 = vmatpush.msra.mxu0 0.0
    %421 = vmatpush.msra.mxu0 0.0
    %422 = vmatpush.msra.mxu0 0.0
    %423 = vmatpush.msra.mxu0 0.0
    %424 = vmatpush.msra.mxu0 0.0
    %425 = vmatpush.msra.mxu0 %v379
    %426 = vmatpush.msra.mxu0 %v366
    %427 = vmatpush.msra.mxu0 %v365
    %428 = vmatpush.msra.mxu0 %v364
    %429 = vmatmul.f32.gmra.mxu0 %v408
    %v430 = vpop.f32.mrf.mxu0
    %v431 = vadd.f32 0.0, %v430
    %432 = vmatmul.f32.gmra.mxu0 %v411
    %v433 = vpop.f32.mrf.mxu0
    %v434 = vadd.f32 0.0, %v433
    %435 = vdwg.mxu0
    %v436 = vmax.f32 %v399, %v431
    %v437 = vmax.f32 %v402, %v434
    %v438 = vld [vmem:[%s5] sm:$0xff]
    %v439 = vld [vmem:[%s5 + $0x8] sm:$0xff]
    %v440 = vld [vmem:[%s5 + $0x10] sm:$0xff]
    %v441 = vld [vmem:[%s5 + $0x18] sm:$0xff]
    %v442 = vld [vmem:[%s5 + $0x20] sm:$0xff]
    %v443 = vld [vmem:[%s5 + $0x28] sm:$0xff]
    %v444 = vld [vmem:[%s5 + $0x30] sm:$0xff]
    %v445 = vld [vmem:[%s5 + $0x38] sm:$0xff]
    %v446 = vld [vmem:[%s5 + $0x40] sm:$0xff]
    %v447 = vld [vmem:[%s5 + $0x48] sm:$0xff]
    %v448 = vld [vmem:[%s5 + $0x50] sm:$0xff]
    %v449 = vld [vmem:[%s5 + $0x58] sm:$0xff]
    %v450 = vld [vmem:[%s5 + $0x60] sm:$0xff]
    %v451 = vld [vmem:[%s5 + $0x68] sm:$0xff]
    %vm452 = vcmask 916480
    %v454 = vsel %vm452, %v436, 0
    %v457 = vsel %vm452, %v437, 0
    %459 = vmatpush.msra.mxu0 0.0
    %460 = vmatpush.msra.mxu0 0.0
    %461 = vmatpush.msra.mxu0 %v451
    %462 = vmatpush.msra.mxu0 %v450
    %463 = vmatpush.msra.mxu0 %v449
    %464 = vmatpush.msra.mxu0 %v448
    %465 = vmatpush.msra.mxu0 %v447
    %466 = vmatpush.msra.mxu0 %v446
    %467 = vmatpush.msra.mxu0 %v445
    %468 = vmatpush.msra.mxu0 %v444
    %469 = vmatpush.msra.mxu0 %v443
    %470 = vmatpush.msra.mxu0 %v442
    %471 = vmatpush.msra.mxu0 %v441
    %472 = vmatpush.msra.mxu0 %v440
    %473 = vmatpush.msra.mxu0 %v439
    %474 = vmatpush.msra.mxu0 %v438
    %475 = vmatmul.f32.gmra.mxu0 %v454
    %v476 = vpop.f32.mrf.mxu0
    %v477 = vadd.f32 0.0, %v476
    %478 = vmatmul.f32.gmra.mxu0 %v457
    %v479 = vpop.f32.mrf.mxu0
    %v480 = vadd.f32 0.0, %v479
    %481 = vdwg.mxu0
    %s482 = scalar_lea.vmem %s5, 112
    %v483 = vld [vmem:[%s482] sm:$0xff]
    %v484 = vld [vmem:[%s482 + $0x8] sm:$0xff]
    %v485 = vld [vmem:[%s482 + $0x10] sm:$0xff]
    %v486 = vld [vmem:[%s482 + $0x18] sm:$0xff]
    %v487 = vld [vmem:[%s482 + $0x20] sm:$0xff]
    %v488 = vld [vmem:[%s482 + $0x28] sm:$0xff]
    %v489 = vld [vmem:[%s482 + $0x30] sm:$0xff]
    %v490 = vld [vmem:[%s482 + $0x38] sm:$0xff]
    %v491 = vld [vmem:[%s482 + $0x40] sm:$0xff]
    %v492 = vld [vmem:[%s482 + $0x48] sm:$0xff]
    %v493 = vld [vmem:[%s482 + $0x50] sm:$0xff]
    %v494 = vld [vmem:[%s482 + $0x58] sm:$0xff]
    %v495 = vld [vmem:[%s482 + $0x60] sm:$0xff]
    %v496 = vld [vmem:[%s482 + $0x68] sm:$0xff]
    %497 = vmatpush.msra.mxu0 0.0
    %498 = vmatpush.msra.mxu0 0.0
    %499 = vmatpush.msra.mxu0 %v496
    %500 = vmatpush.msra.mxu0 %v495
    %501 = vmatpush.msra.mxu0 %v494
    %502 = vmatpush.msra.mxu0 %v493
    %503 = vmatpush.msra.mxu0 %v492
    %504 = vmatpush.msra.mxu0 %v491
    %505 = vmatpush.msra.mxu0 %v490
    %506 = vmatpush.msra.mxu0 %v489
    %507 = vmatpush.msra.mxu0 %v488
    %508 = vmatpush.msra.mxu0 %v487
    %509 = vmatpush.msra.mxu0 %v486
    %510 = vmatpush.msra.mxu0 %v485
    %511 = vmatpush.msra.mxu0 %v484
    %512 = vmatpush.msra.mxu0 %v483
    %513 = vmatmul.f32.gmra.mxu0 %v454
    %v514 = vpop.f32.mrf.mxu0
    %v515 = vadd.f32 0.0, %v514
    %516 = vmatmul.f32.gmra.mxu0 %v457
    %v517 = vpop.f32.mrf.mxu0
    %v518 = vadd.f32 0.0, %v517
    %519 = vdwg.mxu0
    %v520 = vmax.f32 %v477, %v515
    %v521 = vmax.f32 %v480, %v518
    %v522 = vld [vmem:[%s6] sm:$0xff]
    %v523 = vld [vmem:[%s6 + $0x8] sm:$0x3]
    %vm524 = vcmask 113664
    %v526 = vsel %vm524, %v522, 0
    %v529 = vsel %vm524, %v523, 0
    %vm531 = vcmask 1045504
    %v533 = vsel %vm531, %v521, 0
    %535 = vmatpush.msra.mxu0 0.0
    %536 = vmatpush.msra.mxu0 0.0
    %537 = vmatpush.msra.mxu0 0.0
    %538 = vmatpush.msra.mxu0 0.0
    %539 = vmatpush.msra.mxu0 0.0
    %540 = vmatpush.msra.mxu0 0.0
    %541 = vmatpush.msra.mxu0 0.0
    %542 = vmatpush.msra.mxu0 0.0
    %543 = vmatpush.msra.mxu0 0.0
    %544 = vmatpush.msra.mxu0 0.0
    %545 = vmatpush.msra.mxu0 0.0
    %546 = vmatpush.msra.mxu0 0.0
    %547 = vmatpush.msra.mxu0 0.0
    %548 = vmatpush.msra.mxu0 0.0
    %549 = vmatpush.msra.mxu0 %v533
    %550 = vmatpush.msra.mxu0 %v520
    %551 = vmatmul.f32.gmra.mxu0 %v526
    %v552 = vpop.f32.mrf.mxu0
    %v553 = vadd.f32 0.0, %v552
    %554 = vmatmul.f32.gmra.mxu0 %v529
    %v555 = vpop.f32.mrf.mxu0
    %v556 = vadd.f32 0.0, %v555
    %557 = vdwg.mxu0
    %v558 = vld [vmem:[%s7] sm:$0xff]
    %v559 = vld [vmem:[%s7 + $0x8] sm:$0xff]
    %v560 = vld [vmem:[%s7 + $0x10] sm:$0xff]
    %v561 = vld [vmem:[%s7 + $0x18] sm:$0xff]
    %v562 = vld [vmem:[%s7 + $0x20] sm:$0xff]
    %v563 = vld [vmem:[%s7 + $0x28] sm:$0xff]
    %v564 = vld [vmem:[%s7 + $0x30] sm:$0xff]
    %s565 = scalar_lea.vmem %s6, 16
    %v566 = vld [vmem:[%s565] sm:$0xff]
    %v567 = vld [vmem:[%s565 + $0x8] sm:$0x3]
    %v569 = vsel %vm524, %v566, 0
    %v572 = vsel %vm524, %v567, 0
    %574 = vmatpush.msra.mxu0 0.0
    %575 = vmatpush.msra.mxu0 0.0
    %576 = vmatpush.msra.mxu0 0.0
    %577 = vmatpush.msra.mxu0 0.0
    %578 = vmatpush.msra.mxu0 0.0
    %579 = vmatpush.msra.mxu0 0.0
    %580 = vmatpush.msra.mxu0 0.0
    %581 = vmatpush.msra.mxu0 0.0
    %582 = vmatpush.msra.mxu0 0.0
    %583 = vmatpush.msra.mxu0 0.0
    %584 = vmatpush.msra.mxu0 0.0
    %585 = vmatpush.msra.mxu0 0.0
    %586 = vmatpush.msra.mxu0 0.0
    %587 = vmatpush.msra.mxu0 0.0
    %588 = vmatpush.msra.mxu0 %v533
    %589 = vmatpush.msra.mxu0 %v520
    %590 = vmatmul.f32.gmra.mxu0 %v569
    %v591 = vpop.f32.mrf.mxu0
    %v592 = vadd.f32 0.0, %v591
    %593 = vmatmul.f32.gmra.mxu0 %v572
    %v594 = vpop.f32.mrf.mxu0
    %v595 = vadd.f32 0.0, %v594
    %596 = vdwg.mxu0
    %s597 = scalar_lea.vmem %s7, 56
    %v598 = vld [vmem:[%s597] sm:$0xff]
    %v599 = vld [vmem:[%s597 + $0x8] sm:$0xff]
    %v600 = vld [vmem:[%s597 + $0x10] sm:$0xff]
    %v601 = vld [vmem:[%s597 + $0x18] sm:$0xff]
    %v602 = vld [vmem:[%s597 + $0x20] sm:$0xff]
    %v603 = vld [vmem:[%s597 + $0x28] sm:$0xff]
    %v604 = vld [vmem:[%s597 + $0x30] sm:$0xff]
    %vm605 = vcmask 457728
    %v607 = vsel %vm605, %v592, 0
    %v610 = vsel %vm605, %v595, 0
    %612 = vmatpush.msra.mxu0 0.0
    %613 = vmatpush.msra.mxu0 0.0
    %614 = vmatpush.msra.mxu0 0.0
    %615 = vmatpush.msra.mxu0 0.0
    %616 = vmatpush.msra.mxu0 0.0
    %617 = vmatpush.msra.mxu0 0.0
    %618 = vmatpush.msra.mxu0 0.0
    %619 = vmatpush.msra.mxu0 0.0
    %620 = vmatpush.msra.mxu0 0.0
    %621 = vmatpush.msra.mxu0 %v604
    %622 = vmatpush.msra.mxu0 %v603
    %623 = vmatpush.msra.mxu0 %v602
    %624 = vmatpush.msra.mxu0 %v601
    %625 = vmatpush.msra.mxu0 %v600
    %626 = vmatpush.msra.mxu0 %v599
    %627 = vmatpush.msra.mxu0 %v598
    %628 = vmatmul.f32.gmra.mxu0 %v607
    %v629 = vpop.f32.mrf.mxu0
    %v630 = vadd.f32 0.0, %v629
    %631 = vmatmul.f32.gmra.mxu0 %v610
    %v632 = vpop.f32.mrf.mxu0
    %v633 = vadd.f32 0.0, %v632
    %634 = vdwg.mxu0
    %v636 = vsel %vm605, %v553, 0
    %v639 = vsel %vm605, %v556, 0
    %641 = vmatpush.msra.mxu0 0.0
    %642 = vmatpush.msra.mxu0 0.0
    %643 = vmatpush.msra.mxu0 0.0
    %644 = vmatpush.msra.mxu0 0.0
    %645 = vmatpush.msra.mxu0 0.0
    %646 = vmatpush.msra.mxu0 0.0
    %647 = vmatpush.msra.mxu0 0.0
    %648 = vmatpush.msra.mxu0 0.0
    %649 = vmatpush.msra.mxu0 0.0
    %650 = vmatpush.msra.mxu0 %v564
    %651 = vmatpush.msra.mxu0 %v563
    %652 = vmatpush.msra.mxu0 %v562
    %653 = vmatpush.msra.mxu0 %v561
    %654 = vmatpush.msra.mxu0 %v560
    %655 = vmatpush.msra.mxu0 %v559
    %656 = vmatpush.msra.mxu0 %v558
    %657 = vmatmul.f32.gmra.mxu0 %v636
    %v658 = vpop.f32.mrf.mxu0
    %v659 = vadd.f32 %v630, %v658
    %660 = vmatmul.f32.gmra.mxu0 %v639
    %v661 = vpop.f32.mrf.mxu0
    %v662 = vadd.f32 %v633, %v661
    %663 = vdwg.mxu0
    %s664 = scalar_lea.vmem %s6, 32
    %v665 = vld [vmem:[%s664] sm:$0xff]
    %v666 = vld [vmem:[%s664 + $0x8] sm:$0x3]
    %v668 = vsel %vm524, %v665, 0
    %v671 = vsel %vm524, %v666, 0
    %673 = vmatpush.msra.mxu0 0.0
    %674 = vmatpush.msra.mxu0 0.0
    %675 = vmatpush.msra.mxu0 0.0
    %676 = vmatpush.msra.mxu0 0.0
    %677 = vmatpush.msra.mxu0 0.0
    %678 = vmatpush.msra.mxu0 0.0
    %679 = vmatpush.msra.mxu0 0.0
    %680 = vmatpush.msra.mxu0 0.0
    %681 = vmatpush.msra.mxu0 0.0
    %682 = vmatpush.msra.mxu0 0.0
    %683 = vmatpush.msra.mxu0 0.0
    %684 = vmatpush.msra.mxu0 0.0
    %685 = vmatpush.msra.mxu0 0.0
    %686 = vmatpush.msra.mxu0 0.0
    %687 = vmatpush.msra.mxu0 %v533
    %688 = vmatpush.msra.mxu0 %v520
    %689 = vmatmul.f32.gmra.mxu0 %v668
    %v690 = vpop.f32.mrf.mxu0
    %v691 = vadd.f32 0.0, %v690
    %692 = vmatmul.f32.gmra.mxu0 %v671
    %v693 = vpop.f32.mrf.mxu0
    %v694 = vadd.f32 0.0, %v693
    %695 = vdwg.mxu0
    %s696 = scalar_lea.vmem %s7, 112
    %v697 = vld [vmem:[%s696] sm:$0xff]
    %v698 = vld [vmem:[%s696 + $0x8] sm:$0xff]
    %v699 = vld [vmem:[%s696 + $0x10] sm:$0xff]
    %v700 = vld [vmem:[%s696 + $0x18] sm:$0xff]
    %v701 = vld [vmem:[%s696 + $0x20] sm:$0xff]
    %v702 = vld [vmem:[%s696 + $0x28] sm:$0xff]
    %v703 = vld [vmem:[%s696 + $0x30] sm:$0xff]
    %v705 = vsel %vm605, %v691, 0
    %v708 = vsel %vm605, %v694, 0
    %710 = vmatpush.msra.mxu0 0.0
    %711 = vmatpush.msra.mxu0 0.0
    %712 = vmatpush.msra.mxu0 0.0
    %713 = vmatpush.msra.mxu0 0.0
    %714 = vmatpush.msra.mxu0 0.0
    %715 = vmatpush.msra.mxu0 0.0
    %716 = vmatpush.msra.mxu0 0.0
    %717 = vmatpush.msra.mxu0 0.0
    %718 = vmatpush.msra.mxu0 0.0
    %719 = vmatpush.msra.mxu0 %v703
    %720 = vmatpush.msra.mxu0 %v702
    %721 = vmatpush.msra.mxu0 %v701
    %722 = vmatpush.msra.mxu0 %v700
    %723 = vmatpush.msra.mxu0 %v699
    %724 = vmatpush.msra.mxu0 %v698
    %725 = vmatpush.msra.mxu0 %v697
    %726 = vmatmul.f32.gmra.mxu0 %v705
    %v727 = vpop.f32.mrf.mxu0
    %v728 = vadd.f32 0.0, %v727
    %729 = vmatmul.f32.gmra.mxu0 %v708
    %v730 = vpop.f32.mrf.mxu0
    %v731 = vadd.f32 0.0, %v730
    %732 = vdwg.mxu0
    %v733 = vadd.f32 %v659, %v728
    %v734 = vadd.f32 %v662, %v731
    %v735 = vld [vmem:[%s8] sm:$0x1]
    %v737 = vperm.slane %v735, 0
    %v739 = vadd.f32 %v733, %v737
    %v740 = vadd.f32 %v734, %v737
    %v741 = vmax.f32 %v739, 0.0
    %v742 = vmax.f32 %v740, 0.0
    %v743 = vld [vmem:[%s9] sm:$0xf]
    %vm744 = vcmask 80896
    %v746 = vsel %vm744, %v743, 0
    %vm748 = vcmask 1041408
    %v750 = vsel %vm748, %v742, 0
    %752 = vmatpush.msra.mxu0 0.0
    %753 = vmatpush.msra.mxu0 0.0
    %754 = vmatpush.msra.mxu0 0.0
    %755 = vmatpush.msra.mxu0 0.0
    %756 = vmatpush.msra.mxu0 0.0
    %757 = vmatpush.msra.mxu0 0.0
    %758 = vmatpush.msra.mxu0 0.0
    %759 = vmatpush.msra.mxu0 0.0
    %760 = vmatpush.msra.mxu0 0.0
    %761 = vmatpush.msra.mxu0 0.0
    %762 = vmatpush.msra.mxu0 0.0
    %763 = vmatpush.msra.mxu0 0.0
    %764 = vmatpush.msra.mxu0 0.0
    %765 = vmatpush.msra.mxu0 0.0
    %766 = vmatpush.msra.mxu0 %v750
    %767 = vmatpush.msra.mxu0 %v741
    %768 = vmatmul.f32.gmra.mxu0 %v746
    %v769 = vpop.f32.mrf.mxu0
    %v770 = vadd.f32 0.0, %v769
    %771 = vdwg.mxu0
    %s772 = scalar_lea.vmem %s9, 4
    %v773 = vld [vmem:[%s772] sm:$0xf]
    %v775 = vsel %vm744, %v773, 0
    %777 = vmatpush.msra.mxu0 0.0
    %778 = vmatpush.msra.mxu0 0.0
    %779 = vmatpush.msra.mxu0 0.0
    %780 = vmatpush.msra.mxu0 0.0
    %781 = vmatpush.msra.mxu0 0.0
    %782 = vmatpush.msra.mxu0 0.0
    %783 = vmatpush.msra.mxu0 0.0
    %784 = vmatpush.msra.mxu0 0.0
    %785 = vmatpush.msra.mxu0 0.0
    %786 = vmatpush.msra.mxu0 0.0
    %787 = vmatpush.msra.mxu0 0.0
    %788 = vmatpush.msra.mxu0 0.0
    %789 = vmatpush.msra.mxu0 0.0
    %790 = vmatpush.msra.mxu0 0.0
    %791 = vmatpush.msra.mxu0 %v750
    %792 = vmatpush.msra.mxu0 %v741
    %793 = vmatmul.f32.gmra.mxu0 %v775
    %v794 = vpop.f32.mrf.mxu0
    %v795 = vadd.f32 0.0, %v794
    %796 = vdwg.mxu0
    %v797 = vmax.f32 %v770, %v795
    %v798 = vld [vmem:[%s10] sm:$0xff]
    %v799 = vld [vmem:[%s10 + $0x8] sm:$0xff]
    %v800 = vld [vmem:[%s10 + $0x10] sm:$0xff]
    %v801 = vld [vmem:[%s10 + $0x18] sm:$0xff]
    %v802 = vld [vmem:[%s10 + $0x20] sm:$0xff]
    %v803 = vld [vmem:[%s10 + $0x28] sm:$0xff]
    %v804 = vld [vmem:[%s10 + $0x30] sm:$0xff]
    %v805 = vld [vmem:[%s10 + $0x38] sm:$0xff]
    %v806 = vld [vmem:[%s10 + $0x40] sm:$0xff]
    %v807 = vld [vmem:[%s10 + $0x48] sm:$0xff]
    %vm808 = vcmask 654336
    %v810 = vsel %vm808, %v797, 0
    %812 = vmatpush.msra.mxu0 0.0
    %813 = vmatpush.msra.mxu0 0.0
    %814 = vmatpush.msra.mxu0 0.0
    %815 = vmatpush.msra.mxu0 0.0
    %816 = vmatpush.msra.mxu0 0.0
    %817 = vmatpush.msra.mxu0 0.0
    %818 = vmatpush.msra.mxu0 %v807
    %819 = vmatpush.msra.mxu0 %v806
    %820 = vmatpush.msra.mxu0 %v805
    %821 = vmatpush.msra.mxu0 %v804
    %822 = vmatpush.msra.mxu0 %v803
    %823 = vmatpush.msra.mxu0 %v802
    %824 = vmatpush.msra.mxu0 %v801
    %825 = vmatpush.msra.mxu0 %v800
    %826 = vmatpush.msra.mxu0 %v799
    %827 = vmatpush.msra.mxu0 %v798
    %828 = vmatmul.f32.gmra.mxu0 %v810
    %v829 = vpop.f32.mrf.mxu0
    %v830 = vadd.f32 0.0, %v829
    %831 = vdwg.mxu0
    %s832 = scalar_lea.vmem %s10, 80
    %v833 = vld [vmem:[%s832] sm:$0xff]
    %v834 = vld [vmem:[%s832 + $0x8] sm:$0xff]
    %v835 = vld [vmem:[%s832 + $0x10] sm:$0xff]
    %v836 = vld [vmem:[%s832 + $0x18] sm:$0xff]
    %v837 = vld [vmem:[%s832 + $0x20] sm:$0xff]
    %v838 = vld [vmem:[%s832 + $0x28] sm:$0xff]
    %v839 = vld [vmem:[%s832 + $0x30] sm:$0xff]
    %v840 = vld [vmem:[%s832 + $0x38] sm:$0xff]
    %v841 = vld [vmem:[%s832 + $0x40] sm:$0xff]
    %v842 = vld [vmem:[%s832 + $0x48] sm:$0xff]
    %843 = vmatpush.msra.mxu0 0.0
    %844 = vmatpush.msra.mxu0 0.0
    %845 = vmatpush.msra.mxu0 0.0
    %846 = vmatpush.msra.mxu0 0.0
    %847 = vmatpush.msra.mxu0 0.0
    %848 = vmatpush.msra.mxu0 0.0
    %849 = vmatpush.msra.mxu0 %v842
    %850 = vmatpush.msra.mxu0 %v841
    %851 = vmatpush.msra.mxu0 %v840
    %852 = vmatpush.msra.mxu0 %v839
    %853 = vmatpush.msra.mxu0 %v838
    %854 = vmatpush.msra.mxu0 %v837
    %855 = vmatpush.msra.mxu0 %v836
    %856 = vmatpush.msra.mxu0 %v835
    %857 = vmatpush.msra.mxu0 %v834
    %858 = vmatpush.msra.mxu0 %v833
    %859 = vmatmul.f32.gmra.mxu0 %v810
    %v860 = vpop.f32.mrf.mxu0
    %v861 = vadd.f32 0.0, %v860
    %862 = vdwg.mxu0
    %v863 = vmax.f32 %v830, %v861
    %v864 = vld [vmem:[%s11] sm:$0x3]
    %vm865 = vcmask 31744
    %v867 = vsel %vm865, %v864, 0
    %v870 = vsel %vm377, %v863, 0
    %872 = vmatpush.msra.mxu0 0.0
    %873 = vmatpush.msra.mxu0 0.0
    %874 = vmatpush.msra.mxu0 0.0
    %875 = vmatpush.msra.mxu0 0.0
    %876 = vmatpush.msra.mxu0 0.0
    %877 = vmatpush.msra.mxu0 0.0
    %878 = vmatpush.msra.mxu0 0.0
    %879 = vmatpush.msra.mxu0 0.0
    %880 = vmatpush.msra.mxu0 0.0
    %881 = vmatpush.msra.mxu0 0.0
    %882 = vmatpush.msra.mxu0 0.0
    %883 = vmatpush.msra.mxu0 0.0
    %884 = vmatpush.msra.mxu0 0.0
    %885 = vmatpush.msra.mxu0 0.0
    %886 = vmatpush.msra.mxu0 0.0
    %887 = vmatpush.msra.mxu0 %v870
    %888 = vmatmul.f32.gmra.mxu0 %v867
    %v889 = vpop.f32.mrf.mxu0
    %v890 = vadd.f32 0.0, %v889
    %891 = vdwg.mxu0
    %v892 = vld [vmem:[%s12] sm:$0xff]
    %v893 = vld [vmem:[%s12 + $0x8] sm:$0xff]
    %v894 = vld [vmem:[%s12 + $0x10] sm:$0xff]
    %v895 = vld [vmem:[%s12 + $0x18] sm:$0xff]
    %s896 = scalar_lea.vmem %s11, 2
    %v897 = vld [vmem:[%s896] sm:$0x3]
    %v899 = vsel %vm865, %v897, 0
    %901 = vmatpush.msra.mxu0 0.0
    %902 = vmatpush.msra.mxu0 0.0
    %903 = vmatpush.msra.mxu0 0.0
    %904 = vmatpush.msra.mxu0 0.0
    %905 = vmatpush.msra.mxu0 0.0
    %906 = vmatpush.msra.mxu0 0.0
    %907 = vmatpush.msra.mxu0 0.0
    %908 = vmatpush.msra.mxu0 0.0
    %909 = vmatpush.msra.mxu0 0.0
    %910 = vmatpush.msra.mxu0 0.0
    %911 = vmatpush.msra.mxu0 0.0
    %912 = vmatpush.msra.mxu0 0.0
    %913 = vmatpush.msra.mxu0 0.0
    %914 = vmatpush.msra.mxu0 0.0
    %915 = vmatpush.msra.mxu0 0.0
    %916 = vmatpush.msra.mxu0 %v870
    %917 = vmatmul.f32.gmra.mxu0 %v899
    %v918 = vpop.f32.mrf.mxu0
    %v919 = vadd.f32 0.0, %v918
    %920 = vdwg.mxu0
    %s921 = scalar_lea.vmem %s12, 32
    %v922 = vld [vmem:[%s921] sm:$0xff]
    %v923 = vld [vmem:[%s921 + $0x8] sm:$0xff]
    %v924 = vld [vmem:[%s921 + $0x10] sm:$0xff]
    %v925 = vld [vmem:[%s921 + $0x18] sm:$0xff]
    %v927 = vsel %vm68, %v919, 0
    %929 = vmatpush.msra.mxu0 0.0
    %930 = vmatpush.msra.mxu0 0.0
    %931 = vmatpush.msra.mxu0 0.0
    %932 = vmatpush.msra.mxu0 0.0
    %933 = vmatpush.msra.mxu0 0.0
    %934 = vmatpush.msra.mxu0 0.0
    %935 = vmatpush.msra.mxu0 0.0
    %936 = vmatpush.msra.mxu0 0.0
    %937 = vmatpush.msra.mxu0 0.0
    %938 = vmatpush.msra.mxu0 0.0
    %939 = vmatpush.msra.mxu0 0.0
    %940 = vmatpush.msra.mxu0 0.0
    %941 = vmatpush.msra.mxu0 %v925
    %942 = vmatpush.msra.mxu0 %v924
    %943 = vmatpush.msra.mxu0 %v923
    %944 = vmatpush.msra.mxu0 %v922
    %945 = vmatmul.f32.gmra.mxu0 %v927
    %v946 = vpop.f32.mrf.mxu0
    %v947 = vadd.f32 0.0, %v946
    %948 = vdwg.mxu0
    %v950 = vsel %vm68, %v890, 0
    %952 = vmatpush.msra.mxu0 0.0
    %953 = vmatpush.msra.mxu0 0.0
    %954 = vmatpush.msra.mxu0 0.0
    %955 = vmatpush.msra.mxu0 0.0
    %956 = vmatpush.msra.mxu0 0.0
    %957 = vmatpush.msra.mxu0 0.0
    %958 = vmatpush.msra.mxu0 0.0
    %959 = vmatpush.msra.mxu0 0.0
    %960 = vmatpush.msra.mxu0 0.0
    %961 = vmatpush.msra.mxu0 0.0
    %962 = vmatpush.msra.mxu0 0.0
    %963 = vmatpush.msra.mxu0 0.0
    %964 = vmatpush.msra.mxu0 %v895
    %965 = vmatpush.msra.mxu0 %v894
    %966 = vmatpush.msra.mxu0 %v893
    %967 = vmatpush.msra.mxu0 %v892
    %968 = vmatmul.f32.gmra.mxu0 %v950
    %v969 = vpop.f32.mrf.mxu0
    %v970 = vadd.f32 %v947, %v969
    %971 = vdwg.mxu0
    %v972 = vld [vmem:[%s13] sm:$0x1]
    %v974 = vperm.slane %v972, 0
    %v976 = vadd.f32 %v970, %v974
    %v977 = vmax.f32 %v976, 0.0
    %v978 = vld [vmem:[%s14] sm:$0xff]
    %v979 = vld [vmem:[%s14 + $0x8] sm:$0xff]
    %v980 = vld [vmem:[%s14 + $0x10] sm:$0xff]
    %v981 = vld [vmem:[%s14 + $0x18] sm:$0xff]
    %v982 = vld [vmem:[%s15] sm:$0x1]
    %v984 = vperm.slane %v982, 0
    %v987 = vsel %vm68, %v977, 0
    %989 = vmatpush.msra.mxu0 0.0
    %990 = vmatpush.msra.mxu0 0.0
    %991 = vmatpush.msra.mxu0 0.0
    %992 = vmatpush.msra.mxu0 0.0
    %993 = vmatpush.msra.mxu0 0.0
    %994 = vmatpush.msra.mxu0 0.0
    %995 = vmatpush.msra.mxu0 0.0
    %996 = vmatpush.msra.mxu0 0.0
    %997 = vmatpush.msra.mxu0 0.0
    %998 = vmatpush.msra.mxu0 0.0
    %999 = vmatpush.msra.mxu0 0.0
    %1000 = vmatpush.msra.mxu0 0.0
    %1001 = vmatpush.msra.mxu0 %v981
    %1002 = vmatpush.msra.mxu0 %v980
    %1003 = vmatpush.msra.mxu0 %v979
    %1004 = vmatpush.msra.mxu0 %v978
    %1005 = vmatmul.f32.gmra.mxu0 %v987
    %v1006 = vpop.f32.mrf.mxu0
    %v1007 = vadd.f32 %v984, %v1006
    %1008 = vdwg.mxu0
    %v1009 = vmax.f32 %v1007, 0.0
    %v1010 = vld [vmem:[%s16] sm:$0xff]
    %v1011 = vld [vmem:[%s16 + $0x8] sm:$0xff]
    %v1012 = vld [vmem:[%s16 + $0x10] sm:$0xff]
    %v1013 = vld [vmem:[%s16 + $0x18] sm:$0xff]
    %v1014 = vld [vmem:[%s17] sm:$0x1]
    %v1016 = vperm.slane %v1014, 0
    %v1019 = vsel %vm68, %v1009, 0
    %1021 = vmatpush.msra.mxu0 0.0
    %1022 = vmatpush.msra.mxu0 0.0
    %1023 = vmatpush.msra.mxu0 0.0
    %1024 = vmatpush.msra.mxu0 0.0
    %1025 = vmatpush.msra.mxu0 0.0
    %1026 = vmatpush.msra.mxu0 0.0
    %1027 = vmatpush.msra.mxu0 0.0
    %1028 = vmatpush.msra.mxu0 0.0
    %1029 = vmatpush.msra.mxu0 0.0
    %1030 = vmatpush.msra.mxu0 0.0
    %1031 = vmatpush.msra.mxu0 0.0
    %1032 = vmatpush.msra.mxu0 0.0
    %1033 = vmatpush.msra.mxu0 %v1013
    %1034 = vmatpush.msra.mxu0 %v1012
    %1035 = vmatpush.msra.mxu0 %v1011
    %1036 = vmatpush.msra.mxu0 %v1010
    %1037 = vmatmul.f32.gmra.mxu0 %v1019
    %v1038 = vpop.f32.mrf.mxu0
    %v1039 = vadd.f32 %v1016, %v1038
    %1040 = vdwg.mxu0
    %vm1041 = vcmask 74752
    %1042 = vst.msk [vmem:[#allocation2] sm:$0x3] %vm1041, %v1039
    // Predicated region
    $region74: #{audio_model_forward.1} parent=1 // pred_check
      _
    $region75: #{audio_model_forward.1} parent=1 // pred_check_branch
      %1044 = sbr.rel (0) target = $region77
    $region76: #{audio_model_forward.1} parent=1 // pred_region
      %1046 = vsyncadd [#allocation3], 0
      %s1048 = sshll.u32 [#allocation2], 4
      %s1049 = int_to_ptr.vmem [resolvable:$true] %s1048
      %s1050 = sshll.u32 %s18, 4
      %s1051 = int_to_ptr.hbm [resolvable:$true] %s1050
      %1053 = dma.vmem_to_hbm [thread:$0]  %s1049, 32, %s1051, [#allocation3]
    $region77: #{audio_model_forward.1} parent=1 // pred_fallthru
      _
    // Predicated region
    $region78: #{audio_model_forward.1} parent=1 // pred_check
      _
    $region79: #{audio_model_forward.1} parent=1 // pred_check_branch
      %1055 = sbr.rel (0) target = $region81
    $region80: #{audio_model_forward.1} parent=1 // pred_region
      %1057 = dma.done [#allocation3], 32
    $region81: #{audio_model_forward.1} parent=1 // pred_fallthru
      _
    %1058 = vsyncpa [#allocation3], 1

</llo_original>
